<compile_context>
chip_gen: v7x
topology: tpu7x:2x2x1
jax: 0.10.0
libtpu: 0.0.40
codegen_flags: <defaults>
</compile_context>

<pallas_src>
import math

import numpy as np
import jax
import jax.numpy as jnp
from jax.experimental import pallas as pl
from jax.experimental.pallas import tpu as pltpu

NUM_SAMPLES = 8   # the module always gathers exactly 8 key/value positions per token


def _sample_positions(seq_len: int) -> np.ndarray:
    """Bug-for-bug replication of the position sampling in the PyTorch forward."""
    all_pos = []
    for t in range(seq_len):
        rel = [i for i in range(-4, 4) if 0 <= t + i < seq_len]
        while len(rel) < NUM_SAMPLES:
            if t + len(rel) < seq_len:
                rel.append(t + len(rel))
            else:
                rel.insert(0, t - (NUM_SAMPLES - len(rel)))
        conv = []
        for p in rel:
            idx = p if p >= 0 else p + seq_len   # torch negative indexing
            assert 0 <= idx < seq_len
            conv.append(idx)
        all_pos.append(conv)
    return np.asarray(all_pos, dtype=np.int32)


def _round_up(x: int, m: int) -> int:
    return ((x + m - 1) // m) * m


def _cdiv(a: int, b: int) -> int:
    return -(-a // b)


def _mha_kernel(posd_ref, q_ref, kvd_ref, wq_ref, bq_ref, wkv_ref, bkv_ref,
                hred_ref, hexp_ref, wo_ref, bo_ref, o_ref):
    """Per-block multi-head attention over 8 sampled keys/values.

    posd_ref: (bn*8, 1) int32   dictionary index per (token, sample)
    q_ref:    (bn, E)           kvd_ref: (Rp, 2E)   raw [K | V] dictionary rows
    wq_ref:   (E, 2E)  q proj into [K|V] lane domain (V half zero, scale folded)
    wkv_ref:  (2E, 2E) block-diag [wkT, wvT]         bq/bkv: (1, 2E) f32
    hred_ref: (2E, nh) 0/1 (K half)   hexp_ref: (nh, 2E) 0/1 (V half)
    wo_ref:   (2E, E)  out proj (K-half rows zero)   bo: (1, E) f32
    """
    bn = q_ref.shape[0]
    s8 = NUM_SAMPLES
    rp, e2 = kvd_ref.shape
    nh = hred_ref.shape[-1]
    cd = q_ref.dtype                  # MXU operand dtype (bf16 or f32)
    f32 = jnp.float32

    # ---- project the tiny per-batch K/V dictionary (Rp rows; negligible) ---
    kvp_d = (jnp.dot(kvd_ref[...], wkv_ref[...], preferred_element_type=f32)
             + bkv_ref[...])                                       # (Rp, 2E)

    # ---- q projection, pre-scaled, packed [K | V] lane domain (V half 0) ---
    qp = (jnp.dot(q_ref[...], wq_ref[...], preferred_element_type=f32)
          + bq_ref[...])                                           # (bn, 2E)

    # ---- gather the 8 sampled projected K/V rows per token (one-hot @ dict) -
    sel = (posd_ref[...] ==
           jax.lax.broadcasted_iota(jnp.int32, (bn * s8, rp), 1)).astype(cd)
    kvp = jnp.dot(sel, kvp_d.astype(cd),
                  preferred_element_type=f32).reshape(bn, s8, e2)  # (bn, 8, 2E)

    # ---- per-head logits via MXU reduce matrix (qp's V half is zero) -------
    prod = qp[:, None, :] * kvp                                    # (bn, 8, 2E)
    logits = jnp.dot(prod.reshape(bn * s8, e2).astype(cd), hred_ref[...],
                     preferred_element_type=f32).reshape(bn, s8, nh)

    # ---- softmax over the 8 sampled positions ------------------------------
    m = jnp.max(logits, axis=1, keepdims=True)                     # (bn, 1, nh)
    p = jnp.exp(logits - m)                                        # (bn, 8, nh)
    w = p / jnp.sum(p, axis=1, keepdims=True)                      # (bn, 8, nh)

    # ---- expand per-head weights onto the V-half lanes, combine with values -
    w_exp = jnp.dot(w.reshape(bn * s8, nh).astype(cd), hexp_ref[...],
                    preferred_element_type=f32).reshape(bn, s8, e2)
    attn = jnp.sum(w_exp * kvp, axis=1)                            # (bn, 2E); K half zero

    out = (jnp.dot(attn.astype(cd), wo_ref[...], preferred_element_type=f32)
           + bo_ref[...])                                          # (bn, E)
    o_ref[...] = out.astype(o_ref.dtype)


def manhattan_attention(q, k, v, params, *, num_heads,
                        block_n=512, compute_dtype=jnp.bfloat16):
    B, S, E = q.shape
    assert E % num_heads == 0
    nh = num_heads
    hd = E // nh
    f32 = jnp.float32
    scale = 1.0 / math.sqrt(hd)

    # ---- static position table and its tiny row "dictionary" ---------------
    pos = _sample_positions(S)                        # (S, 8), values in [0, S)
    drows = np.unique(pos)                            # (R,) distinct rows, R <= min(S, 19)
    R = int(drows.shape[0])
    Rp = max(8, _round_up(R, 8))
    posd_np = np.searchsorted(drows, pos).astype(np.int32)   # (S, 8) in [0, R)

    # ---- token block size: big but keep >= 4 grid steps (v7x has 2 TCs) ----
    bn = max(8, (min(int(block_n), _round_up(S, 8)) // 8) * 8)
    if B * _cdiv(S, bn) < 4:
        bn = max(8, _round_up(_cdiv(S, _cdiv(4, B)), 8))
    Sp = _round_up(S, bn)

    posd_np = np.pad(posd_np, ((0, Sp - S), (0, 0)))          # pad tokens -> dict row 0
    posd = jnp.asarray(posd_np.reshape(Sp * NUM_SAMPLES, 1))  # (Sp*8, 1) int32

    # ---- tiny per-batch K/V dictionary, packed [K | V] along lanes ---------
    kvd = jnp.concatenate([k[:, drows, :], v[:, drows, :]], axis=-1)   # (B, R, 2E)
    kvd = jnp.pad(kvd, ((0, 0), (0, Rp - R), (0, 0))).astype(compute_dtype)

    Q = q.astype(compute_dtype)
    if Sp != S:
        Q = jnp.pad(Q, ((0, 0), (0, Sp - S), (0, 0)))

    # ---- weights: packed 64-lane [K | V] domain, 1/sqrt(hd) folded into q --
    in_w = params["in_proj_weight"]                    # (3E, E): [Wq; Wk; Wv]
    in_b = params["in_proj_bias"]                      # (3E,)
    wqT = in_w[:E].T * scale
    wkT = in_w[E:2 * E].T
    wvT = in_w[2 * E:].T
    zE = jnp.zeros((E, E), in_w.dtype)
    wq64 = jnp.concatenate([wqT, zE], axis=1).astype(compute_dtype)          # (E, 2E)
    wkv = jnp.concatenate(
        [jnp.concatenate([wkT, zE], axis=1),
         jnp.concatenate([zE, wvT], axis=1)], axis=0).astype(compute_dtype)  # (2E, 2E)
    bq64 = jnp.concatenate([in_b[:E] * scale,
                            jnp.zeros((E,), in_b.dtype)]).reshape(1, 2 * E).astype(f32)
    bkv = in_b[E:].reshape(1, 2 * E).astype(f32)
    woT = params["out_proj_weight"].T
    wo64 = jnp.concatenate([jnp.zeros((E, E), woT.dtype), woT],
                           axis=0).astype(compute_dtype)                     # (2E, E)
    bo = params["out_proj_bias"].reshape(1, E).astype(f32)

    # static 0/1 per-head reduce / expand matrices in the 64-lane domain
    h1 = (np.arange(E)[:, None] // hd == np.arange(nh)[None, :]).astype(np.float32)  # (E, nh)
    hred64 = jnp.asarray(np.concatenate([h1, np.zeros_like(h1)], axis=0),
                         compute_dtype)                                      # (2E, nh)
    hexp64 = jnp.asarray(np.concatenate([np.zeros_like(h1.T), h1.T], axis=1),
                         compute_dtype)                                      # (nh, 2E)

    grid = (B, Sp // bn)
    q_spec = pl.BlockSpec((None, bn, E), lambda b, i: (b, i, 0))
    o_spec = pl.BlockSpec((None, bn, E), lambda b, i: (b, i, 0))
    pos_spec = pl.BlockSpec((bn * NUM_SAMPLES, 1), lambda b, i: (i, 0))
    kvd_spec = pl.BlockSpec((None, Rp, 2 * E), lambda b, i: (b, 0, 0))

    def _const(shape):
        zeros = (0,) * len(shape)
        return pl.BlockSpec(shape, lambda b, i: zeros)

    out = pl.pallas_call(
        _mha_kernel,
        out_shape=jax.ShapeDtypeStruct((B, Sp, E), q.dtype),
        grid_spec=pltpu.PrefetchScalarGridSpec(
            num_scalar_prefetch=0,
            grid=grid,
            in_specs=[pos_spec, q_spec, kvd_spec,
                      _const((E, 2 * E)), _const((1, 2 * E)),
                      _const((2 * E, 2 * E)), _const((1, 2 * E)),
                      _const((2 * E, nh)), _const((nh, 2 * E)),
                      _const((2 * E, E)), _const((1, E))],
            out_specs=o_spec,
        ),
        compiler_params=pltpu.CompilerParams(
            dimension_semantics=("parallel", "parallel"),
            vmem_limit_bytes=32 * 1024 * 1024),
    )(posd, Q, kvd, wq64, bq64, wkv, bkv, hred64, hexp64, wo64, bo)
    return out[:, :S, :]


def manhattan_attention_reference(q, k, v, params, *, num_heads):
    """Pure-JAX f32 reference of the same forward (eval mode), for validation."""
    B, S, E = q.shape
    hd = E // num_heads
    pos = _sample_positions(S)
    k_s = k[:, pos, :].reshape(B * S, NUM_SAMPLES, E)
    v_s = v[:, pos, :].reshape(B * S, NUM_SAMPLES, E)
    Q = q.reshape(B * S, E)
    in_w = params["in_proj_weight"]
    in_b = params["in_proj_bias"]
    qp = Q @ in_w[:E].T + in_b[:E]
    kp = k_s @ in_w[E:2 * E].T + in_b[E:2 * E]
    vp = v_s @ in_w[2 * E:].T + in_b[2 * E:]
    qh = qp.reshape(B * S, num_heads, hd)
    kh = kp.reshape(B * S, NUM_SAMPLES, num_heads, hd)
    vh = vp.reshape(B * S, NUM_SAMPLES, num_heads, hd)
    logits = jnp.einsum('nhd,nshd->nhs', qh, kh) / math.sqrt(hd)
    w = jax.nn.softmax(logits, axis=-1)
    o = jnp.einsum('nhs,nshd->nhd', w, vh).reshape(B * S, E)
    o = o @ params["out_proj_weight"].T + params["out_proj_bias"]
    return o.reshape(B, S, E)


if __name__ == "__main__":
    batch, seq_len, embed_dim, num_heads = 2, 8, 32, 8

    key = jax.random.PRNGKey(0)
    kq, kk, kv, kw1, kb1, kw2, kb2 = jax.random.split(key, 7)

    q = jax.random.normal(kq, (batch, seq_len, embed_dim), dtype=jnp.float32)
    k = jax.random.normal(kk, (batch, seq_len, embed_dim), dtype=jnp.float32)
    v = jax.random.normal(kv, (batch, seq_len, embed_dim), dtype=jnp.float32)

    # deterministic synthetic parameters matching nn.MultiheadAttention shapes
    params = {
        "in_proj_weight": 0.1 * jax.random.normal(kw1, (3 * embed_dim, embed_dim), jnp.float32),
        "in_proj_bias":   0.1 * jax.random.normal(kb1, (3 * embed_dim,), jnp.float32),
        "out_proj_weight": 0.1 * jax.random.normal(kw2, (embed_dim, embed_dim), jnp.float32),
        "out_proj_bias":   0.1 * jax.random.normal(kb2, (embed_dim,), jnp.float32),
    }

    # fast path: bf16 MXU operands, f32 accumulation
    out_bf16 = manhattan_attention(q, k, v, params, num_heads=num_heads)
    out_bf16 = jax.block_until_ready(out_bf16)

    # exact path: f32 everywhere
    out_f32 = manhattan_attention(q, k, v, params, num_heads=num_heads,
                                  compute_dtype=jnp.float32)
    out_f32 = jax.block_until_ready(out_f32)

    ref = manhattan_attention_reference(q, k, v, params, num_heads=num_heads)
    ref = jax.block_until_ready(ref)

    assert out_bf16.shape == (batch, seq_len, embed_dim)
    assert out_f32.shape == (batch, seq_len, embed_dim)
    np.testing.assert_allclose(np.asarray(out_f32), np.asarray(ref), atol=1e-4, rtol=1e-4)
    np.testing.assert_allclose(np.asarray(out_bf16), np.asarray(ref), atol=3e-2, rtol=3e-2)
    print("KERNEL_OK")
</pallas_src>

<mosaic_0001>
module attributes {stable_mosaic.version = 11 : i64} {
  func.func @_mha_kernel(%arg0: i32, %arg1: i32, %arg2: memref<64x1xi32, #tpu.memory_space<vmem>>, %arg3: memref<1x8x32xbf16, #tpu.memory_space<vmem>>, %arg4: memref<1x8x64xbf16, #tpu.memory_space<vmem>>, %arg5: memref<32x64xbf16, #tpu.memory_space<vmem>>, %arg6: memref<1x64xf32, #tpu.memory_space<vmem>>, %arg7: memref<64x64xbf16, #tpu.memory_space<vmem>>, %arg8: memref<1x64xf32, #tpu.memory_space<vmem>>, %arg9: memref<64x8xbf16, #tpu.memory_space<vmem>>, %arg10: memref<8x64xbf16, #tpu.memory_space<vmem>>, %arg11: memref<64x32xbf16, #tpu.memory_space<vmem>>, %arg12: memref<1x32xf32, #tpu.memory_space<vmem>>, %arg13: memref<1x8x32xf32, #tpu.memory_space<vmem>>) attributes {dimension_semantics = [#tpu.dimension_semantics<parallel>, #tpu.dimension_semantics<parallel>], iteration_bounds = array<i64: 2, 1>, scalar_prefetch = 0 : i64, scratch_operands = 0 : i64, tpu.core_type = #tpu.core_type<tc>, window_params = [{transform_indices = @transform_0, window_bounds = array<i64: 64, 1>}, {transform_indices = @transform_1, window_bounds = array<i64: 1, 8, 32>}, {transform_indices = @transform_2, window_bounds = array<i64: 1, 8, 64>}, {pipeline_mode = #tpu.pipeline_mode<synchronous>, transform_indices = @transform_3, window_bounds = array<i64: 32, 64>}, {pipeline_mode = #tpu.pipeline_mode<synchronous>, transform_indices = @transform_4, window_bounds = array<i64: 1, 64>}, {pipeline_mode = #tpu.pipeline_mode<synchronous>, transform_indices = @transform_5, window_bounds = array<i64: 64, 64>}, {pipeline_mode = #tpu.pipeline_mode<synchronous>, transform_indices = @transform_6, window_bounds = array<i64: 1, 64>}, {pipeline_mode = #tpu.pipeline_mode<synchronous>, transform_indices = @transform_7, window_bounds = array<i64: 64, 8>}, {pipeline_mode = #tpu.pipeline_mode<synchronous>, transform_indices = @transform_8, window_bounds = array<i64: 8, 64>}, {pipeline_mode = #tpu.pipeline_mode<synchronous>, transform_indices = @transform_9, window_bounds = array<i64: 64, 32>}, {pipeline_mode = #tpu.pipeline_mode<synchronous>, transform_indices = @transform_10, window_bounds = array<i64: 1, 32>}, {transform_indices = @transform_11, window_bounds = array<i64: 1, 8, 32>}]} {
    %c0 = arith.constant 0 : index
    %c0_0 = arith.constant 0 : index
    %c0_1 = arith.constant 0 : index
    %0 = vector.load %arg4[%c0, %c0_0, %c0_1] : memref<1x8x64xbf16, #tpu.memory_space<vmem>>, vector<1x8x64xbf16>
    %1 = vector.shape_cast %0 : vector<1x8x64xbf16> to vector<8x64xbf16>
    %c0_2 = arith.constant 0 : index
    %c0_3 = arith.constant 0 : index
    %2 = vector.load %arg7[%c0_2, %c0_3] : memref<64x64xbf16, #tpu.memory_space<vmem>>, vector<64x64xbf16>
    %cst = arith.constant dense<0.000000e+00> : vector<8x64xf32>
    %3 = tpu.matmul %1, %2, %cst {dimension_numbers = #tpu.dot_dimension_numbers<[1], [0], [0], [1], [0, 0, 1, 1], [], []>} : vector<8x64xbf16>, vector<64x64xbf16>, vector<8x64xf32> -> vector<8x64xf32>
    %c0_4 = arith.constant 0 : index
    %c0_5 = arith.constant 0 : index
    %4 = vector.load %arg8[%c0_4, %c0_5] : memref<1x64xf32, #tpu.memory_space<vmem>>, vector<1x64xf32>
    %5 = vector.broadcast %4 : vector<1x64xf32> to vector<8x64xf32>
    %6 = arith.addf %3, %5 : vector<8x64xf32>
    %c0_6 = arith.constant 0 : index
    %c0_7 = arith.constant 0 : index
    %c0_8 = arith.constant 0 : index
    %7 = vector.load %arg3[%c0_6, %c0_7, %c0_8] : memref<1x8x32xbf16, #tpu.memory_space<vmem>>, vector<1x8x32xbf16>
    %8 = vector.shape_cast %7 : vector<1x8x32xbf16> to vector<8x32xbf16>
    %c0_9 = arith.constant 0 : index
    %c0_10 = arith.constant 0 : index
    %9 = vector.load %arg5[%c0_9, %c0_10] : memref<32x64xbf16, #tpu.memory_space<vmem>>, vector<32x64xbf16>
    %cst_11 = arith.constant dense<0.000000e+00> : vector<8x64xf32>
    %10 = tpu.matmul %8, %9, %cst_11 {dimension_numbers = #tpu.dot_dimension_numbers<[1], [0], [0], [1], [0, 0, 1, 1], [], []>} : vector<8x32xbf16>, vector<32x64xbf16>, vector<8x64xf32> -> vector<8x64xf32>
    %c0_12 = arith.constant 0 : index
    %c0_13 = arith.constant 0 : index
    %11 = vector.load %arg6[%c0_12, %c0_13] : memref<1x64xf32, #tpu.memory_space<vmem>>, vector<1x64xf32>
    %12 = vector.broadcast %11 : vector<1x64xf32> to vector<8x64xf32>
    %13 = arith.addf %10, %12 : vector<8x64xf32>
    %c0_14 = arith.constant 0 : index
    %c0_15 = arith.constant 0 : index
    %14 = vector.load %arg2[%c0_14, %c0_15] : memref<64x1xi32, #tpu.memory_space<vmem>>, vector<64x1xi32>
    %15 = tpu.iota {dimensions = array<i32: 1>} : vector<64x8xi32>
    %16 = vector.broadcast %14 : vector<64x1xi32> to vector<64x8xi32>
    %17 = arith.cmpi eq, %16, %15 : vector<64x8xi32>
    %18 = arith.extui %17 : vector<64x8xi1> to vector<64x8xi32>
    %19 = arith.sitofp %18 : vector<64x8xi32> to vector<64x8xf32>
    %20 = arith.truncf %19 : vector<64x8xf32> to vector<64x8xbf16>
    %21 = arith.truncf %6 : vector<8x64xf32> to vector<8x64xbf16>
    %cst_16 = arith.constant dense<0.000000e+00> : vector<64x64xf32>
    %22 = tpu.matmul %20, %21, %cst_16 {dimension_numbers = #tpu.dot_dimension_numbers<[1], [0], [0], [1], [0, 0, 1, 1], [], []>} : vector<64x8xbf16>, vector<8x64xbf16>, vector<64x64xf32> -> vector<64x64xf32>
    %23 = vector.shape_cast %22 : vector<64x64xf32> to vector<8x8x64xf32>
    %24 = vector.shape_cast %13 : vector<8x64xf32> to vector<8x1x64xf32>
    %25 = vector.broadcast %24 : vector<8x1x64xf32> to vector<8x8x64xf32>
    %26 = arith.mulf %25, %23 : vector<8x8x64xf32>
    %27 = vector.shape_cast %26 : vector<8x8x64xf32> to vector<64x64xf32>
    %28 = arith.truncf %27 : vector<64x64xf32> to vector<64x64xbf16>
    %c0_17 = arith.constant 0 : index
    %c0_18 = arith.constant 0 : index
    %29 = vector.load %arg9[%c0_17, %c0_18] : memref<64x8xbf16, #tpu.memory_space<vmem>>, vector<64x8xbf16>
    %cst_19 = arith.constant dense<0.000000e+00> : vector<64x8xf32>
    %30 = tpu.matmul %28, %29, %cst_19 {dimension_numbers = #tpu.dot_dimension_numbers<[1], [0], [0], [1], [0, 0, 1, 1], [], []>} : vector<64x64xbf16>, vector<64x8xbf16>, vector<64x8xf32> -> vector<64x8xf32>
    %31 = vector.shape_cast %30 : vector<64x8xf32> to vector<8x8x8xf32>
    %cst_20 = arith.constant dense<0xFF800000> : vector<8x8xf32>
    %32 = vector.multi_reduction <maximumf>, %31, %cst_20 [1] : vector<8x8x8xf32> to vector<8x8xf32>
    %33 = vector.shape_cast %32 : vector<8x8xf32> to vector<8x1x8xf32>
    %34 = vector.broadcast %33 : vector<8x1x8xf32> to vector<8x8x8xf32>
    %35 = arith.subf %31, %34 : vector<8x8x8xf32>
    %36 = math.exp %35 : vector<8x8x8xf32>
    %cst_21 = arith.constant dense<0.000000e+00> : vector<8x8xf32>
    %37 = vector.multi_reduction <add>, %36, %cst_21 [1] : vector<8x8x8xf32> to vector<8x8xf32>
    %38 = vector.shape_cast %37 : vector<8x8xf32> to vector<8x1x8xf32>
    %39 = vector.broadcast %38 : vector<8x1x8xf32> to vector<8x8x8xf32>
    %40 = arith.divf %36, %39 : vector<8x8x8xf32>
    %41 = vector.shape_cast %40 : vector<8x8x8xf32> to vector<64x8xf32>
    %42 = arith.truncf %41 : vector<64x8xf32> to vector<64x8xbf16>
    %c0_22 = arith.constant 0 : index
    %c0_23 = arith.constant 0 : index
    %43 = vector.load %arg10[%c0_22, %c0_23] : memref<8x64xbf16, #tpu.memory_space<vmem>>, vector<8x64xbf16>
    %cst_24 = arith.constant dense<0.000000e+00> : vector<64x64xf32>
    %44 = tpu.matmul %42, %43, %cst_24 {dimension_numbers = #tpu.dot_dimension_numbers<[1], [0], [0], [1], [0, 0, 1, 1], [], []>} : vector<64x8xbf16>, vector<8x64xbf16>, vector<64x64xf32> -> vector<64x64xf32>
    %45 = vector.shape_cast %44 : vector<64x64xf32> to vector<8x8x64xf32>
    %46 = arith.mulf %45, %23 : vector<8x8x64xf32>
    %cst_25 = arith.constant dense<0.000000e+00> : vector<8x64xf32>
    %47 = vector.multi_reduction <add>, %46, %cst_25 [1] : vector<8x8x64xf32> to vector<8x64xf32>
    %48 = arith.truncf %47 : vector<8x64xf32> to vector<8x64xbf16>
    %c0_26 = arith.constant 0 : index
    %c0_27 = arith.constant 0 : index
    %49 = vector.load %arg11[%c0_26, %c0_27] : memref<64x32xbf16, #tpu.memory_space<vmem>>, vector<64x32xbf16>
    %cst_28 = arith.constant dense<0.000000e+00> : vector<8x32xf32>
    %50 = tpu.matmul %48, %49, %cst_28 {dimension_numbers = #tpu.dot_dimension_numbers<[1], [0], [0], [1], [0, 0, 1, 1], [], []>} : vector<8x64xbf16>, vector<64x32xbf16>, vector<8x32xf32> -> vector<8x32xf32>
    %c0_29 = arith.constant 0 : index
    %c0_30 = arith.constant 0 : index
    %51 = vector.load %arg12[%c0_29, %c0_30] : memref<1x32xf32, #tpu.memory_space<vmem>>, vector<1x32xf32>
    %52 = vector.broadcast %51 : vector<1x32xf32> to vector<8x32xf32>
    %53 = arith.addf %50, %52 : vector<8x32xf32>
    %c0_31 = arith.constant 0 : index
    %c0_32 = arith.constant 0 : index
    %c0_33 = arith.constant 0 : index
    %54 = vector.load %arg13[%c0_31, %c0_32, %c0_33] : memref<1x8x32xf32, #tpu.memory_space<vmem>>, vector<1x8x32xf32>
    %55 = vector.shape_cast %54 : vector<1x8x32xf32> to vector<8x32xf32>
    %56 = vector.shape_cast %53 : vector<8x32xf32> to vector<1x8x32xf32>
    tpu.vector_store %arg13[%c0_31, %c0_32, %c0_33], %56 {strides = array<i32>} : memref<1x8x32xf32, #tpu.memory_space<vmem>>, vector<1x8x32xf32>,
    return
  }
  func.func @transform_0(%arg0: i32, %arg1: i32) -> (i32, i32) {
    %c0_i32 = arith.constant 0 : i32
    %c0_i32_0 = arith.constant 0 : i32
    return %arg1, %c0_i32 : i32, i32
  }
  func.func @transform_1(%arg0: i32, %arg1: i32) -> (i32, i32, i32) {
    %c0_i32 = arith.constant 0 : i32
    %c0_i32_0 = arith.constant 0 : i32
    return %arg0, %arg1, %c0_i32 : i32, i32, i32
  }
  func.func @transform_2(%arg0: i32, %arg1: i32) -> (i32, i32, i32) {
    %c0_i32 = arith.constant 0 : i32
    %c0_i32_0 = arith.constant 0 : i32
    %c0_i32_1 = arith.constant 0 : i32
    return %arg0, %c0_i32, %c0_i32_0 : i32, i32, i32
  }
  func.func @transform_3(%arg0: i32, %arg1: i32) -> (i32, i32) {
    %c0_i32 = arith.constant 0 : i32
    %c0_i32_0 = arith.constant 0 : i32
    %c0_i32_1 = arith.constant 0 : i32
    return %c0_i32, %c0_i32_0 : i32, i32
  }
  func.func @transform_4(%arg0: i32, %arg1: i32) -> (i32, i32) {
    %c0_i32 = arith.constant 0 : i32
    %c0_i32_0 = arith.constant 0 : i32
    %c0_i32_1 = arith.constant 0 : i32
    return %c0_i32, %c0_i32_0 : i32, i32
  }
  func.func @transform_5(%arg0: i32, %arg1: i32) -> (i32, i32) {
    %c0_i32 = arith.constant 0 : i32
    %c0_i32_0 = arith.constant 0 : i32
    %c0_i32_1 = arith.constant 0 : i32
    return %c0_i32, %c0_i32_0 : i32, i32
  }
  func.func @transform_6(%arg0: i32, %arg1: i32) -> (i32, i32) {
    %c0_i32 = arith.constant 0 : i32
    %c0_i32_0 = arith.constant 0 : i32
    %c0_i32_1 = arith.constant 0 : i32
    return %c0_i32, %c0_i32_0 : i32, i32
  }
  func.func @transform_7(%arg0: i32, %arg1: i32) -> (i32, i32) {
    %c0_i32 = arith.constant 0 : i32
    %c0_i32_0 = arith.constant 0 : i32
    %c0_i32_1 = arith.constant 0 : i32
    return %c0_i32, %c0_i32_0 : i32, i32
  }
  func.func @transform_8(%arg0: i32, %arg1: i32) -> (i32, i32) {
    %c0_i32 = arith.constant 0 : i32
    %c0_i32_0 = arith.constant 0 : i32
    %c0_i32_1 = arith.constant 0 : i32
    return %c0_i32, %c0_i32_0 : i32, i32
  }
  func.func @transform_9(%arg0: i32, %arg1: i32) -> (i32, i32) {
    %c0_i32 = arith.constant 0 : i32
    %c0_i32_0 = arith.constant 0 : i32
    %c0_i32_1 = arith.constant 0 : i32
    return %c0_i32, %c0_i32_0 : i32, i32
  }
  func.func @transform_10(%arg0: i32, %arg1: i32) -> (i32, i32) {
    %c0_i32 = arith.constant 0 : i32
    %c0_i32_0 = arith.constant 0 : i32
    %c0_i32_1 = arith.constant 0 : i32
    return %c0_i32, %c0_i32_0 : i32, i32
  }
  func.func @transform_11(%arg0: i32, %arg1: i32) -> (i32, i32, i32) {
    %c0_i32 = arith.constant 0 : i32
    %c0_i32_0 = arith.constant 0 : i32
    return %arg0, %arg1, %c0_i32 : i32, i32, i32
  }
}

</mosaic_0001>

<llo_original>
// kernel: tpu_custom_call.1
$region0: #{tpu_custom_call.1}
  #allocation0 [shape = 'u32[]', space=smem, size = 0x4, offset = 0x4, fixed_abs, tag = 'smem constant byte address 0x4 - core index']
  #allocation1 [shape = 'u32[144,128]{1,0:T(1,128)}', space=vmem, size = 0x12000, scoped, tag = 'internal scratch']
  %s0 = inlined_call_operand.vmem [shape: s32[64,1], index: 0, kind: input, shape index: {}]
  %s1 = inlined_call_operand.vmem [shape: bf16[2,8,32], index: 1, kind: input, shape index: {}]
  %s2 = inlined_call_operand.vmem [shape: bf16[2,8,64], index: 2, kind: input, shape index: {}]
  %s3 = inlined_call_operand.vmem [shape: bf16[32,64], index: 3, kind: input, shape index: {}]
  %s4 = inlined_call_operand.vmem [shape: f32[1,64], index: 4, kind: input, shape index: {}]
  %s5 = inlined_call_operand.vmem [shape: bf16[64,64], index: 5, kind: input, shape index: {}]
  %s6 = inlined_call_operand.vmem [shape: f32[1,64], index: 6, kind: input, shape index: {}]
  %s7 = inlined_call_operand.vmem [shape: bf16[64,8], index: 7, kind: input, shape index: {}]
  %s8 = inlined_call_operand.vmem [shape: bf16[8,64], index: 8, kind: input, shape index: {}]
  %s9 = inlined_call_operand.vmem [shape: bf16[64,32], index: 9, kind: input, shape index: {}]
  %s10 = inlined_call_operand.vmem [shape: f32[1,32], index: 10, kind: input, shape index: {}]
  %s11 = inlined_call_operand.hbm [shape: f32[2,8,32], index: 11, kind: output, shape index: {}]
  %s12 = sld [smem:[#allocation0]]
  $region77: #{tpu_custom_call.1} parent=0
    _
  %s14 = ssub.s32 1, %s12
  %s15 = scalar_select 0, %s14, %s12
  $region1: #{tpu_custom_call.1} parent=0
    #allocation2 [shape = 'u8[8192]{0}', space=vmem, size = 0x2000, scoped, tag = 'output window, operand 0']
    #allocation3 [shape = 's32[2]{0}', space=sflag, size = 0x8, scoped, tag = 'scoped memory for tpu_custom_call.1']
    %16 = vsyncpa [#allocation3], 0
    %s17 = scalar_lea.sflag [#allocation3], 1
    %18 = vsyncpa %s17, 0
    loop: start=0, step=1, limit=4
    $region2: #{tpu_custom_call.1} parent=1 // loop_pre_header
      _
    $region3: #{tpu_custom_call.1} parent=1 // loop_header
      %s20 = sphi 0, %s24
      %p21 = scmp.ge.s32.totalorder %s20, 4
      %s27 = sphi 0, %s39
      %s28 = sphi 0, %s35
      %s29 = sphi 0, %s27
      %s30 = sphi 0, %s28
      %s31 = sphi 0, %s29
      %s32 = sphi 0, %s30
      %s42 = sphi 0, %s44
      %s45 = sphi 0, %s42
      %s46 = sphi 0, %s45
      %s62 = sphi 0, %s46
      %s70 = sphi 0, %s72
      %s73 = sphi 0, %s70
      %s74 = sphi 0, %s73
      %s90 = sphi 0, %s74
      %s96 = sphi 0, %s98
      %s99 = sphi 0, %s96
      %s100 = sphi 0, %s99
      %s116 = sphi 0, %s100
      %s120 = sphi 0, %s120
      %s122 = sphi 0, %s120
      %s123 = sphi 0, %s122
      %s137 = sphi 0, %s123
      %s141 = sphi 0, %s141
      %s143 = sphi 0, %s141
      %s144 = sphi 0, %s143
      %s158 = sphi 0, %s144
      %s162 = sphi 0, %s162
      %s164 = sphi 0, %s162
      %s165 = sphi 0, %s164
      %s179 = sphi 0, %s165
      %s183 = sphi 0, %s183
      %s185 = sphi 0, %s183
      %s186 = sphi 0, %s185
      %s200 = sphi 0, %s186
      %s204 = sphi 0, %s204
      %s206 = sphi 0, %s204
      %s207 = sphi 0, %s206
      %s221 = sphi 0, %s207
      %s225 = sphi 0, %s225
      %s227 = sphi 0, %s225
      %s228 = sphi 0, %s227
      %s242 = sphi 0, %s228
      %s246 = sphi 0, %s246
      %s248 = sphi 0, %s246
      %s249 = sphi 0, %s248
      %s263 = sphi 0, %s249
      %s267 = sphi 0, %s267
      %s269 = sphi 0, %s267
      %s270 = sphi 0, %s269
      %s284 = sphi 0, %s270
      %s292 = sphi 0, %s294
      %s295 = sphi 0, %s292
      %s296 = sphi 0, %s295
      %s312 = sphi 0, %s296
    $region4: #{tpu_custom_call.1} parent=1 // loop_header_branch
      %23 = sbr.rel (%p21) target = $region8
    $region5: #{tpu_custom_call.1} parent=1 // loop_body
      %s25 = ssub.s32 %s20, 1
      %s26 = ssub.s32 %s20, 2
      %s33 = sadd.s32 1, %s28
      %p34 = scmp.ge.s32.totalorder %s33, 1
      %s35 = scalar_select %p34, 0, %s33
      %s36 = sadd.s32 1, %s27
      %s37 = scalar_select %p34, %s36, %s27
      %p38 = scmp.ge.s32.totalorder %s37, 2
      %s39 = scalar_select %p38, 0, %s37
      %s40 = ssub.s32 %s28, %s35
      %p41 = scmp.eq.s32.totalorder %s40, 0
      %s43 = sadd.s32 %s42, 1
      %s44 = scalar_select %p41, %s42, %s43
      %p47 = pneg %p41
      %p48 = scmp.eq.s32.totalorder %s20, 1
      %p49 = por %p47, %p48
      %p50 = scmp.ne.s32.totalorder %s42, %s45
      %p51 = scmp.eq.s32.totalorder %s20, 0
      %p52 = por %p50, %p51
      %p53 = scmp.ne.s32.totalorder %s42, %s45
      %p54 = scmp.eq.s32.totalorder %s25, 1
      %p55 = por %p53, %p54
      %p56 = scmp.ne.s32.totalorder %s45, %s46
      %p57 = scmp.eq.s32.totalorder %s25, 0
      %p58 = por %p56, %p57
      %p59 = scmp.ne.s32.totalorder %s45, %s46
      %p60 = scmp.eq.s32.totalorder %s26, 1
      %p61 = por %p59, %p60
      %p63 = scmp.ne.s32.totalorder %s46, %s62
      %p64 = scmp.eq.s32.totalorder %s26, 0
      %p65 = por %p63, %p64
      %s66 = ssub.s32 %s27, %s39
      %s67 = ssub.s32 %s28, %s35
      %s68 = sor.u32 %s66, %s67
      %p69 = scmp.eq.s32.totalorder %s68, 0
      %s71 = sadd.s32 %s70, 1
      %s72 = scalar_select %p69, %s70, %s71
      %p75 = pneg %p69
      %p76 = scmp.eq.s32.totalorder %s20, 1
      %p77 = por %p75, %p76
      %p78 = scmp.ne.s32.totalorder %s70, %s73
      %p79 = scmp.eq.s32.totalorder %s20, 0
      %p80 = por %p78, %p79
      %p81 = scmp.ne.s32.totalorder %s70, %s73
      %p82 = scmp.eq.s32.totalorder %s25, 1
      %p83 = por %p81, %p82
      %p84 = scmp.ne.s32.totalorder %s73, %s74
      %p85 = scmp.eq.s32.totalorder %s25, 0
      %p86 = por %p84, %p85
      %p87 = scmp.ne.s32.totalorder %s73, %s74
      %p88 = scmp.eq.s32.totalorder %s26, 1
      %p89 = por %p87, %p88
      %p91 = scmp.ne.s32.totalorder %s74, %s90
      %p92 = scmp.eq.s32.totalorder %s26, 0
      %p93 = por %p91, %p92
      %s94 = ssub.s32 %s27, %s39
      %p95 = scmp.eq.s32.totalorder %s94, 0
      %s97 = sadd.s32 %s96, 1
      %s98 = scalar_select %p95, %s96, %s97
      %p101 = pneg %p95
      %p102 = scmp.eq.s32.totalorder %s20, 1
      %p103 = por %p101, %p102
      %p104 = scmp.ne.s32.totalorder %s96, %s99
      %p105 = scmp.eq.s32.totalorder %s20, 0
      %p106 = por %p104, %p105
      %p107 = scmp.ne.s32.totalorder %s96, %s99
      %p108 = scmp.eq.s32.totalorder %s25, 1
      %p109 = por %p107, %p108
      %p110 = scmp.ne.s32.totalorder %s99, %s100
      %p111 = scmp.eq.s32.totalorder %s25, 0
      %p112 = por %p110, %p111
      %p113 = scmp.ne.s32.totalorder %s99, %s100
      %p114 = scmp.eq.s32.totalorder %s26, 1
      %p115 = por %p113, %p114
      %p117 = scmp.ne.s32.totalorder %s100, %s116
      %p118 = scmp.eq.s32.totalorder %s26, 0
      %p119 = por %p117, %p118
      %s121 = sadd.s32 %s120, 1
      %p124 = scmp.eq.s32.totalorder %s20, 1
      %p125 = scmp.ne.s32.totalorder %s120, %s122
      %p126 = scmp.eq.s32.totalorder %s20, 0
      %p127 = por %p125, %p126
      %p128 = scmp.ne.s32.totalorder %s120, %s122
      %p129 = scmp.eq.s32.totalorder %s25, 1
      %p130 = por %p128, %p129
      %p131 = scmp.ne.s32.totalorder %s122, %s123
      %p132 = scmp.eq.s32.totalorder %s25, 0
      %p133 = por %p131, %p132
      %p134 = scmp.ne.s32.totalorder %s122, %s123
      %p135 = scmp.eq.s32.totalorder %s26, 1
      %p136 = por %p134, %p135
      %p138 = scmp.ne.s32.totalorder %s123, %s137
      %p139 = scmp.eq.s32.totalorder %s26, 0
      %p140 = por %p138, %p139
      %s142 = sadd.s32 %s141, 1
      %p145 = scmp.eq.s32.totalorder %s20, 1
      %p146 = scmp.ne.s32.totalorder %s141, %s143
      %p147 = scmp.eq.s32.totalorder %s20, 0
      %p148 = por %p146, %p147
      %p149 = scmp.ne.s32.totalorder %s141, %s143
      %p150 = scmp.eq.s32.totalorder %s25, 1
      %p151 = por %p149, %p150
      %p152 = scmp.ne.s32.totalorder %s143, %s144
      %p153 = scmp.eq.s32.totalorder %s25, 0
      %p154 = por %p152, %p153
      %p155 = scmp.ne.s32.totalorder %s143, %s144
      %p156 = scmp.eq.s32.totalorder %s26, 1
      %p157 = por %p155, %p156
      %p159 = scmp.ne.s32.totalorder %s144, %s158
      %p160 = scmp.eq.s32.totalorder %s26, 0
      %p161 = por %p159, %p160
      %s163 = sadd.s32 %s162, 1
      %p166 = scmp.eq.s32.totalorder %s20, 1
      %p167 = scmp.ne.s32.totalorder %s162, %s164
      %p168 = scmp.eq.s32.totalorder %s20, 0
      %p169 = por %p167, %p168
      %p170 = scmp.ne.s32.totalorder %s162, %s164
      %p171 = scmp.eq.s32.totalorder %s25, 1
      %p172 = por %p170, %p171
      %p173 = scmp.ne.s32.totalorder %s164, %s165
      %p174 = scmp.eq.s32.totalorder %s25, 0
      %p175 = por %p173, %p174
      %p176 = scmp.ne.s32.totalorder %s164, %s165
      %p177 = scmp.eq.s32.totalorder %s26, 1
      %p178 = por %p176, %p177
      %p180 = scmp.ne.s32.totalorder %s165, %s179
      %p181 = scmp.eq.s32.totalorder %s26, 0
      %p182 = por %p180, %p181
      %s184 = sadd.s32 %s183, 1
      %p187 = scmp.eq.s32.totalorder %s20, 1
      %p188 = scmp.ne.s32.totalorder %s183, %s185
      %p189 = scmp.eq.s32.totalorder %s20, 0
      %p190 = por %p188, %p189
      %p191 = scmp.ne.s32.totalorder %s183, %s185
      %p192 = scmp.eq.s32.totalorder %s25, 1
      %p193 = por %p191, %p192
      %p194 = scmp.ne.s32.totalorder %s185, %s186
      %p195 = scmp.eq.s32.totalorder %s25, 0
      %p196 = por %p194, %p195
      %p197 = scmp.ne.s32.totalorder %s185, %s186
      %p198 = scmp.eq.s32.totalorder %s26, 1
      %p199 = por %p197, %p198
      %p201 = scmp.ne.s32.totalorder %s186, %s200
      %p202 = scmp.eq.s32.totalorder %s26, 0
      %p203 = por %p201, %p202
      %s205 = sadd.s32 %s204, 1
      %p208 = scmp.eq.s32.totalorder %s20, 1
      %p209 = scmp.ne.s32.totalorder %s204, %s206
      %p210 = scmp.eq.s32.totalorder %s20, 0
      %p211 = por %p209, %p210
      %p212 = scmp.ne.s32.totalorder %s204, %s206
      %p213 = scmp.eq.s32.totalorder %s25, 1
      %p214 = por %p212, %p213
      %p215 = scmp.ne.s32.totalorder %s206, %s207
      %p216 = scmp.eq.s32.totalorder %s25, 0
      %p217 = por %p215, %p216
      %p218 = scmp.ne.s32.totalorder %s206, %s207
      %p219 = scmp.eq.s32.totalorder %s26, 1
      %p220 = por %p218, %p219
      %p222 = scmp.ne.s32.totalorder %s207, %s221
      %p223 = scmp.eq.s32.totalorder %s26, 0
      %p224 = por %p222, %p223
      %s226 = sadd.s32 %s225, 1
      %p229 = scmp.eq.s32.totalorder %s20, 1
      %p230 = scmp.ne.s32.totalorder %s225, %s227
      %p231 = scmp.eq.s32.totalorder %s20, 0
      %p232 = por %p230, %p231
      %p233 = scmp.ne.s32.totalorder %s225, %s227
      %p234 = scmp.eq.s32.totalorder %s25, 1
      %p235 = por %p233, %p234
      %p236 = scmp.ne.s32.totalorder %s227, %s228
      %p237 = scmp.eq.s32.totalorder %s25, 0
      %p238 = por %p236, %p237
      %p239 = scmp.ne.s32.totalorder %s227, %s228
      %p240 = scmp.eq.s32.totalorder %s26, 1
      %p241 = por %p239, %p240
      %p243 = scmp.ne.s32.totalorder %s228, %s242
      %p244 = scmp.eq.s32.totalorder %s26, 0
      %p245 = por %p243, %p244
      %s247 = sadd.s32 %s246, 1
      %p250 = scmp.eq.s32.totalorder %s20, 1
      %p251 = scmp.ne.s32.totalorder %s246, %s248
      %p252 = scmp.eq.s32.totalorder %s20, 0
      %p253 = por %p251, %p252
      %p254 = scmp.ne.s32.totalorder %s246, %s248
      %p255 = scmp.eq.s32.totalorder %s25, 1
      %p256 = por %p254, %p255
      %p257 = scmp.ne.s32.totalorder %s248, %s249
      %p258 = scmp.eq.s32.totalorder %s25, 0
      %p259 = por %p257, %p258
      %p260 = scmp.ne.s32.totalorder %s248, %s249
      %p261 = scmp.eq.s32.totalorder %s26, 1
      %p262 = por %p260, %p261
      %p264 = scmp.ne.s32.totalorder %s249, %s263
      %p265 = scmp.eq.s32.totalorder %s26, 0
      %p266 = por %p264, %p265
      %s268 = sadd.s32 %s267, 1
      %p271 = scmp.eq.s32.totalorder %s20, 1
      %p272 = scmp.ne.s32.totalorder %s267, %s269
      %p273 = scmp.eq.s32.totalorder %s20, 0
      %p274 = por %p272, %p273
      %p275 = scmp.ne.s32.totalorder %s267, %s269
      %p276 = scmp.eq.s32.totalorder %s25, 1
      %p277 = por %p275, %p276
      %p278 = scmp.ne.s32.totalorder %s269, %s270
      %p279 = scmp.eq.s32.totalorder %s25, 0
      %p280 = por %p278, %p279
      %p281 = scmp.ne.s32.totalorder %s269, %s270
      %p282 = scmp.eq.s32.totalorder %s26, 1
      %p283 = por %p281, %p282
      %p285 = scmp.ne.s32.totalorder %s270, %s284
      %p286 = scmp.eq.s32.totalorder %s26, 0
      %p287 = por %p285, %p286
      %s288 = ssub.s32 %s27, %s39
      %s289 = ssub.s32 %s28, %s35
      %s290 = sor.u32 %s288, %s289
      %p291 = scmp.eq.s32.totalorder %s290, 0
      %s293 = sadd.s32 %s292, 1
      %s294 = scalar_select %p291, %s292, %s293
      %p297 = pneg %p291
      %p298 = scmp.eq.s32.totalorder %s20, 1
      %p299 = por %p297, %p298
      %p300 = scmp.ne.s32.totalorder %s292, %s295
      %p301 = scmp.eq.s32.totalorder %s20, 0
      %p302 = por %p300, %p301
      %p303 = scmp.ne.s32.totalorder %s292, %s295
      %p304 = scmp.eq.s32.totalorder %s25, 1
      %p305 = por %p303, %p304
      %p306 = scmp.ne.s32.totalorder %s295, %s296
      %p307 = scmp.eq.s32.totalorder %s25, 0
      %p308 = por %p306, %p307
      %p309 = scmp.ne.s32.totalorder %s295, %s296
      %p310 = scmp.eq.s32.totalorder %s26, 1
      %p311 = por %p309, %p310
      %p313 = scmp.ne.s32.totalorder %s296, %s312
      %p314 = scmp.eq.s32.totalorder %s26, 0
      %p315 = por %p313, %p314
      %p316 = scmp.le.s32.totalorder 1, %s20
      %p317 = scmp.lt.s32.totalorder %s20, 3
      %p318 = pnand %p316, %p317
      %p319 = pneg %p318
      // Predicated region
      $region9: #{tpu_custom_call.1} parent=5 // pred_check
        _
      $region10: #{tpu_custom_call.1} parent=5 // pred_check_branch
        %321 = sbr.rel (%p318) target = $region12
      $region11: #{tpu_custom_call.1} parent=5 // pred_region
        %s322 = ssub.s32 %s20, 1
        // Predicated region
        $region13: #{tpu_custom_call.1} parent=11 // pred_check
          %p323 = pneg %p58
        $region14: #{tpu_custom_call.1} parent=11 // pred_check_branch
          %325 = sbr.rel (%p323) target = $region16
        $region15: #{tpu_custom_call.1} parent=11 // pred_region
          %s326 = smul.u32 8, %s30
          %p327 = scmp.lt.s32.totalorder %s326, 7
          %s328 = scalar_select %p327, %s326, 7
          %s329 = smul.addr %s328, 8
          %s330 = scalar_lea.vmem %s0, %s329
          %s331 = smul.u32 8, %s30
        $region16: #{tpu_custom_call.1} parent=11 // pred_fallthru
          _
        // Predicated region
        $region17: #{tpu_custom_call.1} parent=11 // pred_check
          %p332 = pneg %p133
        $region18: #{tpu_custom_call.1} parent=11 // pred_check_branch
          %334 = sbr.rel (%p332) target = $region20
        $region19: #{tpu_custom_call.1} parent=11 // pred_region
          _
        $region20: #{tpu_custom_call.1} parent=11 // pred_fallthru
          _
        // Predicated region
        $region21: #{tpu_custom_call.1} parent=11 // pred_check
          %p335 = pneg %p154
        $region22: #{tpu_custom_call.1} parent=11 // pred_check_branch
          %337 = sbr.rel (%p335) target = $region24
        $region23: #{tpu_custom_call.1} parent=11 // pred_region
          _
        $region24: #{tpu_custom_call.1} parent=11 // pred_fallthru
          _
        // Predicated region
        $region25: #{tpu_custom_call.1} parent=11 // pred_check
          %p338 = pneg %p175
        $region26: #{tpu_custom_call.1} parent=11 // pred_check_branch
          %340 = sbr.rel (%p338) target = $region28
        $region27: #{tpu_custom_call.1} parent=11 // pred_region
          _
        $region28: #{tpu_custom_call.1} parent=11 // pred_fallthru
          _
        // Predicated region
        $region29: #{tpu_custom_call.1} parent=11 // pred_check
          %p341 = pneg %p196
        $region30: #{tpu_custom_call.1} parent=11 // pred_check_branch
          %343 = sbr.rel (%p341) target = $region32
        $region31: #{tpu_custom_call.1} parent=11 // pred_region
          _
        $region32: #{tpu_custom_call.1} parent=11 // pred_fallthru
          _
        // Predicated region
        $region33: #{tpu_custom_call.1} parent=11 // pred_check
          %p344 = pneg %p217
        $region34: #{tpu_custom_call.1} parent=11 // pred_check_branch
          %346 = sbr.rel (%p344) target = $region36
        $region35: #{tpu_custom_call.1} parent=11 // pred_region
          _
        $region36: #{tpu_custom_call.1} parent=11 // pred_fallthru
          _
        // Predicated region
        $region37: #{tpu_custom_call.1} parent=11 // pred_check
          %p347 = pneg %p238
        $region38: #{tpu_custom_call.1} parent=11 // pred_check_branch
          %349 = sbr.rel (%p347) target = $region40
        $region39: #{tpu_custom_call.1} parent=11 // pred_region
          _
        $region40: #{tpu_custom_call.1} parent=11 // pred_fallthru
          _
        // Predicated region
        $region41: #{tpu_custom_call.1} parent=11 // pred_check
          %p350 = pneg %p259
        $region42: #{tpu_custom_call.1} parent=11 // pred_check_branch
          %352 = sbr.rel (%p350) target = $region44
        $region43: #{tpu_custom_call.1} parent=11 // pred_region
          _
        $region44: #{tpu_custom_call.1} parent=11 // pred_fallthru
          _
        // Predicated region
        $region45: #{tpu_custom_call.1} parent=11 // pred_check
          %p353 = pneg %p280
        $region46: #{tpu_custom_call.1} parent=11 // pred_check_branch
          %355 = sbr.rel (%p353) target = $region48
        $region47: #{tpu_custom_call.1} parent=11 // pred_region
          _
        $region48: #{tpu_custom_call.1} parent=11 // pred_fallthru
          _
      $region12: #{tpu_custom_call.1} parent=5 // pred_fallthru
        _
      %p356 = scmp.lt.s32.totalorder %s20, 2
      // Predicated region
      $region49: #{tpu_custom_call.1} parent=5 // pred_check
        %p357 = pneg %p356
      $region50: #{tpu_custom_call.1} parent=5 // pred_check_branch
        %359 = sbr.rel (%p357) target = $region52
      $region51: #{tpu_custom_call.1} parent=5 // pred_region
        // Predicated region
        $region53: #{tpu_custom_call.1} parent=51 // pred_check
          %p360 = pneg %p80
        $region54: #{tpu_custom_call.1} parent=51 // pred_check_branch
          %362 = sbr.rel (%p360) target = $region56
        $region55: #{tpu_custom_call.1} parent=51 // pred_region
          %p363 = scmp.lt.s32.totalorder %s27, 1
          %s364 = scalar_select %p363, %s27, 1
          %p365 = scmp.lt.s32.totalorder %s28, 0
          %s366 = scalar_select %p365, %s28, 0
          %s367 = sadd.s32 %s366, %s364
          %s368 = smul.addr %s367, 4
          %s369 = scalar_lea.vmem %s1, %s368
        $region56: #{tpu_custom_call.1} parent=51 // pred_fallthru
          _
        // Predicated region
        $region57: #{tpu_custom_call.1} parent=51 // pred_check
          %p370 = pneg %p106
        $region58: #{tpu_custom_call.1} parent=51 // pred_check_branch
          %372 = sbr.rel (%p370) target = $region60
        $region59: #{tpu_custom_call.1} parent=51 // pred_region
          %p373 = scmp.lt.s32.totalorder %s27, 1
          %s374 = scalar_select %p373, %s27, 1
          %s375 = smul.addr %s374, 4
          %s376 = scalar_lea.vmem %s2, %s375
        $region60: #{tpu_custom_call.1} parent=51 // pred_fallthru
          _
      $region52: #{tpu_custom_call.1} parent=5 // pred_fallthru
        _
      %p377 = scmp.le.s32.totalorder 1, %s20
      %p378 = scmp.lt.s32.totalorder %s20, 3
      %p379 = pnand %p377, %p378
      %p380 = pneg %p379
      // Predicated region
      $region61: #{tpu_custom_call.1} parent=5 // pred_check
        _
      $region62: #{tpu_custom_call.1} parent=5 // pred_check_branch
        %382 = sbr.rel (%p379) target = $region64
      $region63: #{tpu_custom_call.1} parent=5 // pred_region
        %s383 = ssub.s32 %s20, 1
        %s384 = smul.u32 8, %s30
        %p385 = scmp.lt.s32.totalorder %s384, 7
        %s386 = scalar_select %p385, %s384, 7
        %s387 = smul.addr %s386, 8
        %s388 = scalar_lea.vmem %s0, %s387
        %p389 = pneg %p58
        %p390 = pneg %p55
        %p391 = scmp.lt.s32.totalorder %s29, 1
        %s392 = scalar_select %p391, %s29, 1
        %p393 = scmp.lt.s32.totalorder %s30, 0
        %s394 = scalar_select %p393, %s30, 0
        %s395 = sadd.s32 %s394, %s392
        %s396 = smul.addr %s395, 4
        %s397 = scalar_lea.vmem %s1, %s396
        %p398 = pneg %p86
        %p399 = pneg %p83
        %p400 = scmp.lt.s32.totalorder %s29, 1
        %s401 = scalar_select %p400, %s29, 1
        %s402 = smul.addr %s401, 4
        %s403 = scalar_lea.vmem %s2, %s402
        %p404 = pneg %p112
        %p405 = pneg %p109
        %p406 = pneg %p133
        %p407 = pneg %p130
        %p408 = pneg %p154
        %p409 = pneg %p151
        %p410 = pneg %p175
        %p411 = pneg %p172
        %p412 = pneg %p196
        %p413 = pneg %p193
        %p414 = pneg %p217
        %p415 = pneg %p214
        %p416 = pneg %p238
        %p417 = pneg %p235
        %p418 = pneg %p259
        %p419 = pneg %p256
        %p420 = pneg %p280
        %p421 = pneg %p277
        %p422 = pneg %p308
        %p423 = pneg %p305
        %s424 = sand.u32 %s295, 1
        %s425 = scalar_lea.sflag [#allocation3], %s424
        %s426 = sand.u32 %s295, 1
        %s427 = smul.addr %s426, 8
        %s428 = scalar_lea.vmem [#allocation2], %s427
        %s429 = smul.u32 8, %s30
        %p430 = scmp.lt.s32.totalorder %s429, 7
        %s431 = scalar_select %p430, %s429, 7
        %s432 = smul.addr %s431, 8
        %s433 = scalar_lea.vmem %s0, %s432
        %s434 = smul.u32 8, %s30
        %p435 = scmp.lt.s32.totalorder %s29, 1
        %s436 = scalar_select %p435, %s29, 1
        %p437 = scmp.lt.s32.totalorder %s30, 0
        %s438 = scalar_select %p437, %s30, 0
        %s439 = sadd.s32 %s438, %s436
        %s440 = smul.addr %s439, 4
        %s441 = scalar_lea.vmem %s1, %s440
        %p442 = scmp.lt.s32.totalorder %s29, 1
        %s443 = scalar_select %p442, %s29, 1
        %s444 = smul.addr %s443, 4
        %s445 = scalar_lea.vmem %s2, %s444
        %v447 = vld [vmem:[%s445] sm:$0xf]
        %v448 = vld [vmem:[%s5] sm:$0xf]
        %v449 = vld [vmem:[%s5 + $0x4] sm:$0xf]
        %v450 = vld [vmem:[%s5 + $0x8] sm:$0xf]
        %v451 = vld [vmem:[%s5 + $0xc] sm:$0xf]
        %v452 = vld [vmem:[%s5 + $0x10] sm:$0xf]
        %v453 = vld [vmem:[%s5 + $0x14] sm:$0xf]
        %v454 = vld [vmem:[%s5 + $0x18] sm:$0xf]
        %v455 = vld [vmem:[%s5 + $0x1c] sm:$0xf]
        %v456 = vld [vmem:[%s6] sm:$0x1]
        %v458 = vlaneseq
        %v459 = vshrl.u32 %v458, 7
        %v460 = vsub.s32 0, %v459
        %v461 = vrot.slane %v456, %v460
        %v471 = vunpack.c.l.b16 %v448
        %v472 = vunpack.c.l.b16 %v449
        %v473 = vunpack.c.l.b16 %v450
        %v474 = vunpack.c.l.b16 %v451
        %v475 = vunpack.c.l.b16 %v452
        %v476 = vunpack.c.l.b16 %v453
        %v477 = vunpack.c.l.b16 %v454
        %v478 = vunpack.c.l.b16 %v455
        %v479 = vpack.c.b16 %v472, %v471
        %v480 = vpack.c.b16 %v474, %v473
        %v481 = vpack.c.b16 %v476, %v475
        %v482 = vpack.c.b16 %v478, %v477
        %vm487 = vcmask 523264
        %v489 = vsel %vm487, %v447, 0
        %491 = vmatprep.subr.bf16.mxu0 0
        %492 = vmatpush1.bf16.msra.mxu0 %v479
        %493 = vmatprep.subr.bf16.mxu0 0
        %494 = vmatpush1.bf16.msra.mxu0 %v480
        %495 = vmatprep.subr.bf16.mxu0 0
        %496 = vmatpush1.bf16.msra.mxu0 %v481
        %497 = vmatprep.subr.bf16.mxu0 0
        %498 = vmatpush1.bf16.msra.mxu0 %v482
        %499 = vmatprep.subr.bf16.mxu0 0
        %500 = vmatpush1.bf16.msra.mxu0 0
        %501 = vmatprep.subr.bf16.mxu0 0
        %502 = vmatpush1.bf16.msra.mxu0 0
        %503 = vmatprep.subr.bf16.mxu0 0
        %504 = vmatpush1.bf16.msra.mxu0 0
        %505 = vmatprep.subr.bf16.mxu0 0
        %506 = vmatpush1.bf16.msra.mxu0 0
        %507 = vmatprep.subr.bf16.mxu0 0
        %508 = vmatpush1.bf16.msra.mxu0 0
        %509 = vmatprep.subr.bf16.mxu0 0
        %510 = vmatpush1.bf16.msra.mxu0 0
        %511 = vmatprep.subr.bf16.mxu0 0
        %512 = vmatpush1.bf16.msra.mxu0 0
        %513 = vmatprep.subr.bf16.mxu0 0
        %514 = vmatpush1.bf16.msra.mxu0 0
        %515 = vmatprep.subr.bf16.mxu0 0
        %516 = vmatpush1.bf16.msra.mxu0 0
        %517 = vmatprep.subr.bf16.mxu0 0
        %518 = vmatpush1.bf16.msra.mxu0 0
        %519 = vmatprep.subr.bf16.mxu0 0
        %520 = vmatpush1.bf16.msra.mxu0 0
        %521 = vmatprep.subr.bf16.mxu0 0
        %522 = vmatpush1.bf16.msra.mxu0 0
        %523 = vmatprep.mubr.bf16.mxu0 0
        %524 = vmatmul.mubr.bf16.gmra.mrb[0].mxu0 %v489
        %v525 = vpop.f32.mrb[0].mxu0
        %v526 = vadd.f32 %v461, %v525
        %v527 = vpop.f32.mrb[0].mxu0
        %v528 = vpop.f32.mrb[0].mxu0
        %v529 = vpop.f32.mrb[0].mxu0
        %530 = vdwg.mxu0
        %v531 = vld [vmem:[%s441] sm:$0xf]
        %v532 = vld [vmem:[%s3] sm:$0xf]
        %v533 = vld [vmem:[%s3 + $0x4] sm:$0xf]
        %v534 = vld [vmem:[%s3 + $0x8] sm:$0xf]
        %v535 = vld [vmem:[%s3 + $0xc] sm:$0xf]
        %v536 = vld [vmem:[%s4] sm:$0x1]
        %v538 = vlaneseq
        %v539 = vshrl.u32 %v538, 7
        %v540 = vsub.s32 0, %v539
        %v541 = vrot.slane %v536, %v540
        %v547 = vunpack.c.l.b16 %v532
        %v548 = vunpack.c.l.b16 %v533
        %v549 = vunpack.c.l.b16 %v534
        %v550 = vunpack.c.l.b16 %v535
        %v551 = vpack.c.b16 %v548, %v547
        %v552 = vpack.c.b16 %v550, %v549
        %vm555 = vcmask 261120
        %v557 = vsel %vm555, %v531, 0
        %559 = vmatprep.subr.bf16.mxu0 0
        %560 = vmatpush1.bf16.msra.mxu0 %v551
        %561 = vmatprep.subr.bf16.mxu0 0
        %562 = vmatpush1.bf16.msra.mxu0 %v552
        %563 = vmatprep.subr.bf16.mxu0 0
        %564 = vmatpush1.bf16.msra.mxu0 0
        %565 = vmatprep.subr.bf16.mxu0 0
        %566 = vmatpush1.bf16.msra.mxu0 0
        %567 = vmatprep.subr.bf16.mxu0 0
        %568 = vmatpush1.bf16.msra.mxu0 0
        %569 = vmatprep.subr.bf16.mxu0 0
        %570 = vmatpush1.bf16.msra.mxu0 0
        %571 = vmatprep.subr.bf16.mxu0 0
        %572 = vmatpush1.bf16.msra.mxu0 0
        %573 = vmatprep.subr.bf16.mxu0 0
        %574 = vmatpush1.bf16.msra.mxu0 0
        %575 = vmatprep.subr.bf16.mxu0 0
        %576 = vmatpush1.bf16.msra.mxu0 0
        %577 = vmatprep.subr.bf16.mxu0 0
        %578 = vmatpush1.bf16.msra.mxu0 0
        %579 = vmatprep.subr.bf16.mxu0 0
        %580 = vmatpush1.bf16.msra.mxu0 0
        %581 = vmatprep.subr.bf16.mxu0 0
        %582 = vmatpush1.bf16.msra.mxu0 0
        %583 = vmatprep.subr.bf16.mxu0 0
        %584 = vmatpush1.bf16.msra.mxu0 0
        %585 = vmatprep.subr.bf16.mxu0 0
        %586 = vmatpush1.bf16.msra.mxu0 0
        %587 = vmatprep.subr.bf16.mxu0 0
        %588 = vmatpush1.bf16.msra.mxu0 0
        %589 = vmatprep.subr.bf16.mxu0 0
        %590 = vmatpush1.bf16.msra.mxu0 0
        %591 = vmatprep.mubr.bf16.mxu0 0
        %592 = vmatmul.mubr.bf16.gmra.mrb[0].mxu0 %v557
        %v593 = vpop.f32.mrb[0].mxu0
        %v594 = vadd.f32 %v541, %v593
        %v595 = vpop.f32.mrb[0].mxu0
        %v596 = vpop.f32.mrb[0].mxu0
        %v597 = vpop.f32.mrb[0].mxu0
        %598 = vdwg.mxu0
        %v599 = vld [vmem:[%s433] sm:$0xff]
        %v600 = vld [vmem:[%s433 + $0x8] sm:$0xff]
        %v601 = vld [vmem:[%s433 + $0x10] sm:$0xff]
        %v602 = vld [vmem:[%s433 + $0x18] sm:$0xff]
        %v603 = vld [vmem:[%s433 + $0x20] sm:$0xff]
        %v604 = vld [vmem:[%s433 + $0x28] sm:$0xff]
        %v605 = vld [vmem:[%s433 + $0x30] sm:$0xff]
        %v606 = vld [vmem:[%s433 + $0x38] sm:$0xff]
        %v607 = vlaneseq
        %v608 = vand.u32 %v607, 127
        %609 = vset.pattern.permute.xlu0 0
        %610 = vperm.xlu0 %609, %v599
        %v611 = vpop.permute.xlu0 %610
        %612 = vset.pattern.permute.xlu0 0
        %613 = vperm.xlu0 %612, %v600
        %v614 = vpop.permute.xlu0 %613
        %615 = vset.pattern.permute.xlu0 0
        %616 = vperm.xlu0 %615, %v601
        %v617 = vpop.permute.xlu0 %616
        %618 = vset.pattern.permute.xlu0 0
        %619 = vperm.xlu0 %618, %v602
        %v620 = vpop.permute.xlu0 %619
        %621 = vset.pattern.permute.xlu0 0
        %622 = vperm.xlu0 %621, %v603
        %v623 = vpop.permute.xlu0 %622
        %624 = vset.pattern.permute.xlu0 0
        %625 = vperm.xlu0 %624, %v604
        %v626 = vpop.permute.xlu0 %625
        %627 = vset.pattern.permute.xlu0 0
        %628 = vperm.xlu0 %627, %v605
        %v629 = vpop.permute.xlu0 %628
        %630 = vset.pattern.permute.xlu0 0
        %631 = vperm.xlu0 %630, %v606
        %v632 = vpop.permute.xlu0 %631
        %vm633 = vcmp.eq.s32.totalorder %v611, %v608
        %vm634 = vcmp.eq.s32.totalorder %v614, %v608
        %vm635 = vcmp.eq.s32.totalorder %v617, %v608
        %vm636 = vcmp.eq.s32.totalorder %v620, %v608
        %vm637 = vcmp.eq.s32.totalorder %v623, %v608
        %vm638 = vcmp.eq.s32.totalorder %v626, %v608
        %vm639 = vcmp.eq.s32.totalorder %v629, %v608
        %vm640 = vcmp.eq.s32.totalorder %v632, %v608
        %v641 = vsel %vm633, 1, 0
        %v642 = vsel %vm634, 1, 0
        %v643 = vsel %vm635, 1, 0
        %v644 = vsel %vm636, 1, 0
        %v645 = vsel %vm637, 1, 0
        %v646 = vsel %vm638, 1, 0
        %v647 = vsel %vm639, 1, 0
        %v648 = vsel %vm640, 1, 0
        %v649 = vcvt.s32.f32 %v641
        %v650 = vcvt.s32.f32 %v642
        %v651 = vcvt.s32.f32 %v643
        %v652 = vcvt.s32.f32 %v644
        %v653 = vcvt.s32.f32 %v645
        %v654 = vcvt.s32.f32 %v646
        %v655 = vcvt.s32.f32 %v647
        %v656 = vcvt.s32.f32 %v648
        %v657 = vpack.c.bf16 %v650, %v649
        %v658 = vpack.c.bf16 %v652, %v651
        %v659 = vpack.c.bf16 %v654, %v653
        %v660 = vpack.c.bf16 %v656, %v655
        %v661 = vpack.c.bf16 %v526, %v526
        %vm662 = vcmask 64512
        %v664 = vsel %vm662, %v657, 0
        %v667 = vsel %vm662, %v658, 0
        %v670 = vsel %vm662, %v659, 0
        %v673 = vsel %vm662, %v660, 0
        %vm675 = vcmask 1043456
        %v677 = vsel %vm675, %v661, 0
        %679 = vmatprep.subr.bf16.mxu0 0
        %680 = vmatpush1.bf16.msra.mxu0 %v677
        %681 = vmatprep.subr.bf16.mxu0 0
        %682 = vmatpush1.bf16.msra.mxu0 0
        %683 = vmatprep.subr.bf16.mxu0 0
        %684 = vmatpush1.bf16.msra.mxu0 0
        %685 = vmatprep.subr.bf16.mxu0 0
        %686 = vmatpush1.bf16.msra.mxu0 0
        %687 = vmatprep.subr.bf16.mxu0 0
        %688 = vmatpush1.bf16.msra.mxu0 0
        %689 = vmatprep.subr.bf16.mxu0 0
        %690 = vmatpush1.bf16.msra.mxu0 0
        %691 = vmatprep.subr.bf16.mxu0 0
        %692 = vmatpush1.bf16.msra.mxu0 0
        %693 = vmatprep.subr.bf16.mxu0 0
        %694 = vmatpush1.bf16.msra.mxu0 0
        %695 = vmatprep.subr.bf16.mxu0 0
        %696 = vmatpush1.bf16.msra.mxu0 0
        %697 = vmatprep.subr.bf16.mxu0 0
        %698 = vmatpush1.bf16.msra.mxu0 0
        %699 = vmatprep.subr.bf16.mxu0 0
        %700 = vmatpush1.bf16.msra.mxu0 0
        %701 = vmatprep.subr.bf16.mxu0 0
        %702 = vmatpush1.bf16.msra.mxu0 0
        %703 = vmatprep.subr.bf16.mxu0 0
        %704 = vmatpush1.bf16.msra.mxu0 0
        %705 = vmatprep.subr.bf16.mxu0 0
        %706 = vmatpush1.bf16.msra.mxu0 0
        %707 = vmatprep.subr.bf16.mxu0 0
        %708 = vmatpush1.bf16.msra.mxu0 0
        %709 = vmatprep.subr.bf16.mxu0 0
        %710 = vmatpush1.bf16.msra.mxu0 0
        %711 = vmatprep.mubr.bf16.mxu0 0
        %712 = vmatmul.mubr.bf16.gmra.mrb[0].mxu0 %v664
        %v713 = vpop.f32.mrb[0].mxu0
        %v714 = vadd.f32 0.0, %v713
        %v715 = vpop.f32.mrb[0].mxu0
        %v716 = vpop.f32.mrb[0].mxu0
        %v717 = vadd.f32 0.0, %v716
        %v718 = vpop.f32.mrb[0].mxu0
        %719 = vmatprep.mubr.bf16.mxu0 0
        %720 = vmatmul.mubr.bf16.gmra.mrb[0].mxu0 %v667
        %v721 = vpop.f32.mrb[0].mxu0
        %v722 = vadd.f32 0.0, %v721
        %v723 = vpop.f32.mrb[0].mxu0
        %v724 = vpop.f32.mrb[0].mxu0
        %v725 = vadd.f32 0.0, %v724
        %v726 = vpop.f32.mrb[0].mxu0
        %727 = vmatprep.mubr.bf16.mxu0 0
        %728 = vmatmul.mubr.bf16.gmra.mrb[0].mxu0 %v670
        %v729 = vpop.f32.mrb[0].mxu0
        %v730 = vadd.f32 0.0, %v729
        %v731 = vpop.f32.mrb[0].mxu0
        %v732 = vpop.f32.mrb[0].mxu0
        %v733 = vadd.f32 0.0, %v732
        %v734 = vpop.f32.mrb[0].mxu0
        %735 = vmatprep.mubr.bf16.mxu0 0
        %736 = vmatmul.mubr.bf16.gmra.mrb[0].mxu0 %v673
        %v737 = vpop.f32.mrb[0].mxu0
        %v738 = vadd.f32 0.0, %v737
        %v739 = vpop.f32.mrb[0].mxu0
        %v740 = vpop.f32.mrb[0].mxu0
        %v741 = vadd.f32 0.0, %v740
        %v742 = vpop.f32.mrb[0].mxu0
        %743 = vdwg.mxu0
        %v745 = vcombine.high %v594, %v594
        %v747 = vunpack.c.l.s4 1966171168
        %v748 = vunpack.c.0.s8 %v747
        %v749 = vlaneseq
        %v750 = vshrl.u32 %v749, 7
        %v751 = vsub.s32 %v748, %v750
        %v752 = vrot.slane %v594, %v751
        %v754 = vunpack.c.l.s4 1966171168
        %v755 = vunpack.c.0.s8 %v754
        %v756 = vlaneseq
        %v757 = vshrl.u32 %v756, 7
        %v758 = vsub.s32 %v755, %v757
        %v759 = vrot.slane %v745, %v758
        %v760 = vcombine.high %v752, %v752
        %v761 = vcombine.high %v759, %v759
        %v763 = vunpack.c.l.s4 1966171168
        %v764 = vunpack.c.0.s8 %v763
        %v765 = vlaneseq
        %v766 = vshrl.u32 %v765, 7
        %v767 = vsub.s32 %v764, %v766
        %v768 = vrot.slane %v752, %v767
        %v770 = vunpack.c.l.s4 1966171168
        %v771 = vunpack.c.0.s8 %v770
        %v772 = vlaneseq
        %v773 = vshrl.u32 %v772, 7
        %v774 = vsub.s32 %v771, %v773
        %v775 = vrot.slane %v759, %v774
        %v777 = vunpack.c.l.s4 1966171168
        %v778 = vunpack.c.0.s8 %v777
        %v779 = vlaneseq
        %v780 = vshrl.u32 %v779, 7
        %v781 = vsub.s32 %v778, %v780
        %v782 = vrot.slane %v760, %v781
        %v784 = vunpack.c.l.s4 1966171168
        %v785 = vunpack.c.0.s8 %v784
        %v786 = vlaneseq
        %v787 = vshrl.u32 %v786, 7
        %v788 = vsub.s32 %v785, %v787
        %v789 = vrot.slane %v761, %v788
        %v790 = vcombine.high %v768, %v768
        %v791 = vcombine.high %v775, %v775
        %v792 = vcombine.high %v782, %v782
        %v793 = vcombine.high %v789, %v789
        %v794 = vlaneseq
        %v795 = vshrl.u32 %v794, 7
        %v796 = vsub.s32 0, %v795
        %v797 = vrot.slane %v768, %v796
        %v798 = vlaneseq
        %v799 = vshrl.u32 %v798, 7
        %v800 = vsub.s32 0, %v799
        %v801 = vrot.slane %v782, %v800
        %v802 = vlaneseq
        %v803 = vshrl.u32 %v802, 7
        %v804 = vsub.s32 0, %v803
        %v805 = vrot.slane %v790, %v804
        %v806 = vlaneseq
        %v807 = vshrl.u32 %v806, 7
        %v808 = vsub.s32 0, %v807
        %v809 = vrot.slane %v792, %v808
        %v810 = vlaneseq
        %v811 = vshrl.u32 %v810, 7
        %v812 = vsub.s32 0, %v811
        %v813 = vrot.slane %v775, %v812
        %v814 = vlaneseq
        %v815 = vshrl.u32 %v814, 7
        %v816 = vsub.s32 0, %v815
        %v817 = vrot.slane %v789, %v816
        %v818 = vlaneseq
        %v819 = vshrl.u32 %v818, 7
        %v820 = vsub.s32 0, %v819
        %v821 = vrot.slane %v791, %v820
        %v822 = vlaneseq
        %v823 = vshrl.u32 %v822, 7
        %v824 = vsub.s32 0, %v823
        %v825 = vrot.slane %v793, %v824
        %v834 = vmul.f32 %v797, %v714
        %v835 = vmul.f32 %v801, %v717
        %v836 = vmul.f32 %v805, %v722
        %v837 = vmul.f32 %v809, %v725
        %v838 = vmul.f32 %v813, %v730
        %v839 = vmul.f32 %v817, %v733
        %v840 = vmul.f32 %v821, %v738
        %v841 = vmul.f32 %v825, %v741
        %v842 = vpack.c.bf16 %v835, %v834
        %v843 = vpack.c.bf16 %v837, %v836
        %v844 = vpack.c.bf16 %v839, %v838
        %v845 = vpack.c.bf16 %v841, %v840
        %v846 = vld [vmem:[%s7] sm:$0xf]
        %v847 = vld [vmem:[%s7 + $0x4] sm:$0xf]
        %v848 = vld [vmem:[%s7 + $0x8] sm:$0xf]
        %v849 = vld [vmem:[%s7 + $0xc] sm:$0xf]
        %v850 = vld [vmem:[%s7 + $0x10] sm:$0xf]
        %v851 = vld [vmem:[%s7 + $0x14] sm:$0xf]
        %v852 = vld [vmem:[%s7 + $0x18] sm:$0xf]
        %v853 = vld [vmem:[%s7 + $0x1c] sm:$0xf]
        %v862 = vunpack.c.l.b16 %v846
        %v863 = vunpack.c.l.b16 %v847
        %v864 = vunpack.c.l.b16 %v848
        %v865 = vunpack.c.l.b16 %v849
        %v866 = vunpack.c.l.b16 %v850
        %v867 = vunpack.c.l.b16 %v851
        %v868 = vunpack.c.l.b16 %v852
        %v869 = vunpack.c.l.b16 %v853
        %v870 = vpack.c.b16 %v863, %v862
        %v871 = vpack.c.b16 %v865, %v864
        %v872 = vpack.c.b16 %v867, %v866
        %v873 = vpack.c.b16 %v869, %v868
        %v879 = vsel %vm487, %v842, 0
        %v882 = vsel %vm487, %v843, 0
        %v885 = vsel %vm487, %v844, 0
        %v888 = vsel %vm487, %v845, 0
        %890 = vmatprep.subr.bf16.mxu0 0
        %891 = vmatpush1.bf16.msra.mxu0 %v870
        %892 = vmatprep.subr.bf16.mxu0 0
        %893 = vmatpush1.bf16.msra.mxu0 %v871
        %894 = vmatprep.subr.bf16.mxu0 0
        %895 = vmatpush1.bf16.msra.mxu0 %v872
        %896 = vmatprep.subr.bf16.mxu0 0
        %897 = vmatpush1.bf16.msra.mxu0 %v873
        %898 = vmatprep.subr.bf16.mxu0 0
        %899 = vmatpush1.bf16.msra.mxu0 0
        %900 = vmatprep.subr.bf16.mxu0 0
        %901 = vmatpush1.bf16.msra.mxu0 0
        %902 = vmatprep.subr.bf16.mxu0 0
        %903 = vmatpush1.bf16.msra.mxu0 0
        %904 = vmatprep.subr.bf16.mxu0 0
        %905 = vmatpush1.bf16.msra.mxu0 0
        %906 = vmatprep.subr.bf16.mxu0 0
        %907 = vmatpush1.bf16.msra.mxu0 0
        %908 = vmatprep.subr.bf16.mxu0 0
        %909 = vmatpush1.bf16.msra.mxu0 0
        %910 = vmatprep.subr.bf16.mxu0 0
        %911 = vmatpush1.bf16.msra.mxu0 0
        %912 = vmatprep.subr.bf16.mxu0 0
        %913 = vmatpush1.bf16.msra.mxu0 0
        %914 = vmatprep.subr.bf16.mxu0 0
        %915 = vmatpush1.bf16.msra.mxu0 0
        %916 = vmatprep.subr.bf16.mxu0 0
        %917 = vmatpush1.bf16.msra.mxu0 0
        %918 = vmatprep.subr.bf16.mxu0 0
        %919 = vmatpush1.bf16.msra.mxu0 0
        %920 = vmatprep.subr.bf16.mxu0 0
        %921 = vmatpush1.bf16.msra.mxu0 0
        %922 = vmatprep.mubr.bf16.mxu0 0
        %923 = vmatmul.mubr.bf16.gmra.mrb[0].mxu0 %v879
        %v924 = vpop.f32.mrb[0].mxu0
        %v925 = vadd.f32 0.0, %v924
        %v926 = vpop.f32.mrb[0].mxu0
        %v927 = vpop.f32.mrb[0].mxu0
        %v928 = vadd.f32 0.0, %v927
        %v929 = vpop.f32.mrb[0].mxu0
        %930 = vmatprep.mubr.bf16.mxu0 0
        %931 = vmatmul.mubr.bf16.gmra.mrb[0].mxu0 %v882
        %v932 = vpop.f32.mrb[0].mxu0
        %v933 = vadd.f32 0.0, %v932
        %v934 = vpop.f32.mrb[0].mxu0
        %v935 = vpop.f32.mrb[0].mxu0
        %v936 = vadd.f32 0.0, %v935
        %v937 = vpop.f32.mrb[0].mxu0
        %938 = vmatprep.mubr.bf16.mxu0 0
        %939 = vmatmul.mubr.bf16.gmra.mrb[0].mxu0 %v885
        %v940 = vpop.f32.mrb[0].mxu0
        %v941 = vadd.f32 0.0, %v940
        %v942 = vpop.f32.mrb[0].mxu0
        %v943 = vpop.f32.mrb[0].mxu0
        %v944 = vadd.f32 0.0, %v943
        %v945 = vpop.f32.mrb[0].mxu0
        %946 = vmatprep.mubr.bf16.mxu0 0
        %947 = vmatmul.mubr.bf16.gmra.mrb[0].mxu0 %v888
        %v948 = vpop.f32.mrb[0].mxu0
        %v949 = vadd.f32 0.0, %v948
        %v950 = vpop.f32.mrb[0].mxu0
        %v951 = vpop.f32.mrb[0].mxu0
        %v952 = vadd.f32 0.0, %v951
        %v953 = vpop.f32.mrb[0].mxu0
        %954 = vdwg.mxu0
        %v955 = vsel %vm662, %v925, -inf
        %v956 = vrot.slane %v955, 4
        %v957 = vmax.f32 %v955, %v956
        %v958 = vrot.slane %v957, 2
        %v959 = vmax.f32 %v957, %v958
        %v960 = vrot.slane %v959, 1
        %v961 = vmax.f32 %v959, %v960
        %v962 = vsel %vm662, %v928, -inf
        %v963 = vrot.slane %v962, 4
        %v964 = vmax.f32 %v962, %v963
        %v965 = vrot.slane %v964, 2
        %v966 = vmax.f32 %v964, %v965
        %v967 = vrot.slane %v966, 1
        %v968 = vmax.f32 %v966, %v967
        %v969 = vsel %vm662, %v933, -inf
        %v970 = vrot.slane %v969, 4
        %v971 = vmax.f32 %v969, %v970
        %v972 = vrot.slane %v971, 2
        %v973 = vmax.f32 %v971, %v972
        %v974 = vrot.slane %v973, 1
        %v975 = vmax.f32 %v973, %v974
        %v976 = vsel %vm662, %v936, -inf
        %v977 = vrot.slane %v976, 4
        %v978 = vmax.f32 %v976, %v977
        %v979 = vrot.slane %v978, 2
        %v980 = vmax.f32 %v978, %v979
        %v981 = vrot.slane %v980, 1
        %v982 = vmax.f32 %v980, %v981
        %v983 = vsel %vm662, %v941, -inf
        %v984 = vrot.slane %v983, 4
        %v985 = vmax.f32 %v983, %v984
        %v986 = vrot.slane %v985, 2
        %v987 = vmax.f32 %v985, %v986
        %v988 = vrot.slane %v987, 1
        %v989 = vmax.f32 %v987, %v988
        %v990 = vsel %vm662, %v944, -inf
        %v991 = vrot.slane %v990, 4
        %v992 = vmax.f32 %v990, %v991
        %v993 = vrot.slane %v992, 2
        %v994 = vmax.f32 %v992, %v993
        %v995 = vrot.slane %v994, 1
        %v996 = vmax.f32 %v994, %v995
        %v997 = vsel %vm662, %v949, -inf
        %v998 = vrot.slane %v997, 4
        %v999 = vmax.f32 %v997, %v998
        %v1000 = vrot.slane %v999, 2
        %v1001 = vmax.f32 %v999, %v1000
        %v1002 = vrot.slane %v1001, 1
        %v1003 = vmax.f32 %v1001, %v1002
        %v1004 = vsel %vm662, %v952, -inf
        %v1005 = vrot.slane %v1004, 4
        %v1006 = vmax.f32 %v1004, %v1005
        %v1007 = vrot.slane %v1006, 2
        %v1008 = vmax.f32 %v1006, %v1007
        %v1009 = vrot.slane %v1008, 1
        %v1010 = vmax.f32 %v1008, %v1009
        %v1011 = vsub.f32 %v925, %v961
        %v1012 = vsub.f32 %v928, %v968
        %v1013 = vsub.f32 %v933, %v975
        %v1014 = vsub.f32 %v936, %v982
        %v1015 = vsub.f32 %v941, %v989
        %v1016 = vsub.f32 %v944, %v996
        %v1017 = vsub.f32 %v949, %v1003
        %v1018 = vsub.f32 %v952, %v1010
        %v1019 = vmul.f32 %v1011, 1.442695
        %v1020 = vpow.pop %v1019
        %v1021 = vmul.f32 %v1012, 1.442695
        %v1022 = vpow.pop %v1021
        %v1023 = vmul.f32 %v1013, 1.442695
        %v1024 = vpow.pop %v1023
        %v1025 = vmul.f32 %v1014, 1.442695
        %v1026 = vpow.pop %v1025
        %v1027 = vmul.f32 %v1015, 1.442695
        %v1028 = vpow.pop %v1027
        %v1029 = vmul.f32 %v1016, 1.442695
        %v1030 = vpow.pop %v1029
        %v1031 = vmul.f32 %v1017, 1.442695
        %v1032 = vpow.pop %v1031
        %v1033 = vmul.f32 %v1018, 1.442695
        %v1034 = vpow.pop %v1033
        %v1035 = vsel %vm662, %v1020, 0.0
        %v1036 = vrot.slane %v1035, 4
        %v1037 = vadd.f32 %v1035, %v1036
        %v1038 = vrot.slane %v1037, 2
        %v1039 = vadd.f32 %v1037, %v1038
        %v1040 = vrot.slane %v1039, 1
        %v1041 = vadd.f32 %v1039, %v1040
        %v1042 = vsel %vm662, %v1022, 0.0
        %v1043 = vrot.slane %v1042, 4
        %v1044 = vadd.f32 %v1042, %v1043
        %v1045 = vrot.slane %v1044, 2
        %v1046 = vadd.f32 %v1044, %v1045
        %v1047 = vrot.slane %v1046, 1
        %v1048 = vadd.f32 %v1046, %v1047
        %v1049 = vsel %vm662, %v1024, 0.0
        %v1050 = vrot.slane %v1049, 4
        %v1051 = vadd.f32 %v1049, %v1050
        %v1052 = vrot.slane %v1051, 2
        %v1053 = vadd.f32 %v1051, %v1052
        %v1054 = vrot.slane %v1053, 1
        %v1055 = vadd.f32 %v1053, %v1054
        %v1056 = vsel %vm662, %v1026, 0.0
        %v1057 = vrot.slane %v1056, 4
        %v1058 = vadd.f32 %v1056, %v1057
        %v1059 = vrot.slane %v1058, 2
        %v1060 = vadd.f32 %v1058, %v1059
        %v1061 = vrot.slane %v1060, 1
        %v1062 = vadd.f32 %v1060, %v1061
        %v1063 = vsel %vm662, %v1028, 0.0
        %v1064 = vrot.slane %v1063, 4
        %v1065 = vadd.f32 %v1063, %v1064
        %v1066 = vrot.slane %v1065, 2
        %v1067 = vadd.f32 %v1065, %v1066
        %v1068 = vrot.slane %v1067, 1
        %v1069 = vadd.f32 %v1067, %v1068
        %v1070 = vsel %vm662, %v1030, 0.0
        %v1071 = vrot.slane %v1070, 4
        %v1072 = vadd.f32 %v1070, %v1071
        %v1073 = vrot.slane %v1072, 2
        %v1074 = vadd.f32 %v1072, %v1073
        %v1075 = vrot.slane %v1074, 1
        %v1076 = vadd.f32 %v1074, %v1075
        %v1077 = vsel %vm662, %v1032, 0.0
        %v1078 = vrot.slane %v1077, 4
        %v1079 = vadd.f32 %v1077, %v1078
        %v1080 = vrot.slane %v1079, 2
        %v1081 = vadd.f32 %v1079, %v1080
        %v1082 = vrot.slane %v1081, 1
        %v1083 = vadd.f32 %v1081, %v1082
        %v1084 = vsel %vm662, %v1034, 0.0
        %v1085 = vrot.slane %v1084, 4
        %v1086 = vadd.f32 %v1084, %v1085
        %v1087 = vrot.slane %v1086, 2
        %v1088 = vadd.f32 %v1086, %v1087
        %v1089 = vrot.slane %v1088, 1
        %v1090 = vadd.f32 %v1088, %v1089
        %v1091 = vrcp.pop %v1041
        %v1092 = vmul.f32 %v1020, %v1091
        %v1093 = vrcp.pop %v1048
        %v1094 = vmul.f32 %v1022, %v1093
        %v1095 = vrcp.pop %v1055
        %v1096 = vmul.f32 %v1024, %v1095
        %v1097 = vrcp.pop %v1062
        %v1098 = vmul.f32 %v1026, %v1097
        %v1099 = vrcp.pop %v1069
        %v1100 = vmul.f32 %v1028, %v1099
        %v1101 = vrcp.pop %v1076
        %v1102 = vmul.f32 %v1030, %v1101
        %v1103 = vrcp.pop %v1083
        %v1104 = vmul.f32 %v1032, %v1103
        %v1105 = vrcp.pop %v1090
        %v1106 = vmul.f32 %v1034, %v1105
        %v1107 = vpack.c.bf16 %v1094, %v1092
        %v1108 = vpack.c.bf16 %v1098, %v1096
        %v1109 = vpack.c.bf16 %v1102, %v1100
        %v1110 = vpack.c.bf16 %v1106, %v1104
        %v1111 = vld [vmem:[%s8] sm:$0xf]
        %v1113 = vsel %vm662, %v1107, 0
        %v1116 = vsel %vm662, %v1108, 0
        %v1119 = vsel %vm662, %v1109, 0
        %v1122 = vsel %vm662, %v1110, 0
        %v1125 = vsel %vm675, %v1111, 0
        %1127 = vmatprep.subr.bf16.mxu0 0
        %1128 = vmatpush1.bf16.msra.mxu0 %v1125
        %1129 = vmatprep.subr.bf16.mxu0 0
        %1130 = vmatpush1.bf16.msra.mxu0 0
        %1131 = vmatprep.subr.bf16.mxu0 0
        %1132 = vmatpush1.bf16.msra.mxu0 0
        %1133 = vmatprep.subr.bf16.mxu0 0
        %1134 = vmatpush1.bf16.msra.mxu0 0
        %1135 = vmatprep.subr.bf16.mxu0 0
        %1136 = vmatpush1.bf16.msra.mxu0 0
        %1137 = vmatprep.subr.bf16.mxu0 0
        %1138 = vmatpush1.bf16.msra.mxu0 0
        %1139 = vmatprep.subr.bf16.mxu0 0
        %1140 = vmatpush1.bf16.msra.mxu0 0
        %1141 = vmatprep.subr.bf16.mxu0 0
        %1142 = vmatpush1.bf16.msra.mxu0 0
        %1143 = vmatprep.subr.bf16.mxu0 0
        %1144 = vmatpush1.bf16.msra.mxu0 0
        %1145 = vmatprep.subr.bf16.mxu0 0
        %1146 = vmatpush1.bf16.msra.mxu0 0
        %1147 = vmatprep.subr.bf16.mxu0 0
        %1148 = vmatpush1.bf16.msra.mxu0 0
        %1149 = vmatprep.subr.bf16.mxu0 0
        %1150 = vmatpush1.bf16.msra.mxu0 0
        %1151 = vmatprep.subr.bf16.mxu0 0
        %1152 = vmatpush1.bf16.msra.mxu0 0
        %1153 = vmatprep.subr.bf16.mxu0 0
        %1154 = vmatpush1.bf16.msra.mxu0 0
        %1155 = vmatprep.subr.bf16.mxu0 0
        %1156 = vmatpush1.bf16.msra.mxu0 0
        %1157 = vmatprep.subr.bf16.mxu0 0
        %1158 = vmatpush1.bf16.msra.mxu0 0
        %1159 = vmatprep.mubr.bf16.mxu0 0
        %1160 = vmatmul.mubr.bf16.gmra.mrb[0].mxu0 %v1113
        %v1161 = vpop.f32.mrb[0].mxu0
        %v1162 = vadd.f32 0.0, %v1161
        %v1163 = vpop.f32.mrb[0].mxu0
        %v1164 = vpop.f32.mrb[0].mxu0
        %v1165 = vadd.f32 0.0, %v1164
        %v1166 = vpop.f32.mrb[0].mxu0
        %1167 = vmatprep.mubr.bf16.mxu0 0
        %1168 = vmatmul.mubr.bf16.gmra.mrb[0].mxu0 %v1116
        %v1169 = vpop.f32.mrb[0].mxu0
        %v1170 = vadd.f32 0.0, %v1169
        %v1171 = vpop.f32.mrb[0].mxu0
        %v1172 = vpop.f32.mrb[0].mxu0
        %v1173 = vadd.f32 0.0, %v1172
        %v1174 = vpop.f32.mrb[0].mxu0
        %1175 = vmatprep.mubr.bf16.mxu0 0
        %1176 = vmatmul.mubr.bf16.gmra.mrb[0].mxu0 %v1119
        %v1177 = vpop.f32.mrb[0].mxu0
        %v1178 = vadd.f32 0.0, %v1177
        %v1179 = vpop.f32.mrb[0].mxu0
        %v1180 = vpop.f32.mrb[0].mxu0
        %v1181 = vadd.f32 0.0, %v1180
        %v1182 = vpop.f32.mrb[0].mxu0
        %1183 = vmatprep.mubr.bf16.mxu0 0
        %1184 = vmatmul.mubr.bf16.gmra.mrb[0].mxu0 %v1122
        %v1185 = vpop.f32.mrb[0].mxu0
        %v1186 = vadd.f32 0.0, %v1185
        %v1187 = vpop.f32.mrb[0].mxu0
        %v1188 = vpop.f32.mrb[0].mxu0
        %v1189 = vadd.f32 0.0, %v1188
        %v1190 = vpop.f32.mrb[0].mxu0
        %1191 = vdwg.mxu0
        %v1192 = vmul.f32 %v1162, %v714
        %v1193 = vmul.f32 %v1165, %v717
        %v1194 = vmul.f32 %v1170, %v722
        %v1195 = vmul.f32 %v1173, %v725
        %v1196 = vmul.f32 %v1178, %v730
        %v1197 = vmul.f32 %v1181, %v733
        %v1198 = vmul.f32 %v1186, %v738
        %v1199 = vmul.f32 %v1189, %v741
        %v1200 = vsel %vm487, %v1192, 0.0
        %v1201 = vrot.slane %v1200, 4
        %v1202 = vadd.f32 %v1200, %v1201
        %v1203 = vrot.slane %v1202, 2
        %v1204 = vadd.f32 %v1202, %v1203
        %v1205 = vrot.slane %v1204, 1
        %v1206 = vadd.f32 %v1204, %v1205
        %v1207 = vsel %vm487, %v1193, 0.0
        %v1208 = vrot.slane %v1207, 4
        %v1209 = vadd.f32 %v1207, %v1208
        %v1210 = vrot.slane %v1209, 2
        %v1211 = vadd.f32 %v1209, %v1210
        %v1212 = vrot.slane %v1211, 1
        %v1213 = vadd.f32 %v1211, %v1212
        %v1214 = vsel %vm487, %v1194, 0.0
        %v1215 = vrot.slane %v1214, 4
        %v1216 = vadd.f32 %v1214, %v1215
        %v1217 = vrot.slane %v1216, 2
        %v1218 = vadd.f32 %v1216, %v1217
        %v1219 = vrot.slane %v1218, 1
        %v1220 = vadd.f32 %v1218, %v1219
        %v1221 = vsel %vm487, %v1195, 0.0
        %v1222 = vrot.slane %v1221, 4
        %v1223 = vadd.f32 %v1221, %v1222
        %v1224 = vrot.slane %v1223, 2
        %v1225 = vadd.f32 %v1223, %v1224
        %v1226 = vrot.slane %v1225, 1
        %v1227 = vadd.f32 %v1225, %v1226
        %v1228 = vsel %vm487, %v1196, 0.0
        %v1229 = vrot.slane %v1228, 4
        %v1230 = vadd.f32 %v1228, %v1229
        %v1231 = vrot.slane %v1230, 2
        %v1232 = vadd.f32 %v1230, %v1231
        %v1233 = vrot.slane %v1232, 1
        %v1234 = vadd.f32 %v1232, %v1233
        %v1235 = vsel %vm487, %v1197, 0.0
        %v1236 = vrot.slane %v1235, 4
        %v1237 = vadd.f32 %v1235, %v1236
        %v1238 = vrot.slane %v1237, 2
        %v1239 = vadd.f32 %v1237, %v1238
        %v1240 = vrot.slane %v1239, 1
        %v1241 = vadd.f32 %v1239, %v1240
        %v1242 = vsel %vm487, %v1198, 0.0
        %v1243 = vrot.slane %v1242, 4
        %v1244 = vadd.f32 %v1242, %v1243
        %v1245 = vrot.slane %v1244, 2
        %v1246 = vadd.f32 %v1244, %v1245
        %v1247 = vrot.slane %v1246, 1
        %v1248 = vadd.f32 %v1246, %v1247
        %v1249 = vsel %vm487, %v1199, 0.0
        %v1250 = vrot.slane %v1249, 4
        %v1251 = vadd.f32 %v1249, %v1250
        %v1252 = vrot.slane %v1251, 2
        %v1253 = vadd.f32 %v1251, %v1252
        %v1254 = vrot.slane %v1253, 1
        %v1255 = vadd.f32 %v1253, %v1254
        %v1256 = vpack.c.bf16 %v1206, %v1206
        %v1257 = vpack.c.bf16 %v1213, %v1213
        %v1258 = vpack.c.bf16 %v1220, %v1220
        %v1259 = vpack.c.bf16 %v1227, %v1227
        %v1260 = vpack.c.bf16 %v1234, %v1234
        %v1261 = vpack.c.bf16 %v1241, %v1241
        %v1262 = vpack.c.bf16 %v1248, %v1248
        %v1263 = vpack.c.bf16 %v1255, %v1255
        %v1264 = vld [vmem:[%s9] sm:$0xf]
        %v1265 = vld [vmem:[%s9 + $0x4] sm:$0xf]
        %v1266 = vld [vmem:[%s9 + $0x8] sm:$0xf]
        %v1267 = vld [vmem:[%s9 + $0xc] sm:$0xf]
        %v1268 = vld [vmem:[%s9 + $0x10] sm:$0xf]
        %v1269 = vld [vmem:[%s9 + $0x14] sm:$0xf]
        %v1270 = vld [vmem:[%s9 + $0x18] sm:$0xf]
        %v1271 = vld [vmem:[%s9 + $0x1c] sm:$0xf]
        %v1272 = vld [vmem:[%s10] sm:$0x1]
        %v1274 = vlaneseq
        %v1275 = vshrl.u32 %v1274, 7
        %v1276 = vsub.s32 0, %v1275
        %v1277 = vrot.slane %v1272, %v1276
        %v1287 = vunpack.c.l.b16 %v1256
        %v1288 = vunpack.c.l.b16 %v1257
        %v1289 = vunpack.c.l.b16 %v1258
        %v1290 = vunpack.c.l.b16 %v1259
        %v1291 = vunpack.c.l.b16 %v1260
        %v1292 = vunpack.c.l.b16 %v1261
        %v1293 = vunpack.c.l.b16 %v1262
        %v1294 = vunpack.c.l.b16 %v1263
        %vm1295 = vcmask 1041409
        %v1296 = vsel %vm1295, %v1288, %v1287
        %vm1297 = vcmask 1042434
        %v1298 = vsel %vm1297, %v1289, %v1296
        %vm1299 = vcmask 1043459
        %v1300 = vsel %vm1299, %v1290, %v1298
        %vm1301 = vcmask 1044484
        %v1302 = vsel %vm1301, %v1291, %v1300
        %vm1303 = vcmask 1045509
        %v1304 = vsel %vm1303, %v1292, %v1302
        %vm1305 = vcmask 1046534
        %v1306 = vsel %vm1305, %v1293, %v1304
        %vm1307 = vcmask 1047559
        %v1308 = vsel %vm1307, %v1294, %v1306
        %v1309 = vpack.c.b16 %v1308, %v1308
        %v1318 = vunpack.c.l.b16 %v1264
        %v1319 = vunpack.c.l.b16 %v1265
        %v1320 = vunpack.c.l.b16 %v1266
        %v1321 = vunpack.c.l.b16 %v1267
        %v1322 = vunpack.c.l.b16 %v1268
        %v1323 = vunpack.c.l.b16 %v1269
        %v1324 = vunpack.c.l.b16 %v1270
        %v1325 = vunpack.c.l.b16 %v1271
        %v1326 = vpack.c.b16 %v1319, %v1318
        %v1327 = vpack.c.b16 %v1321, %v1320
        %v1328 = vpack.c.b16 %v1323, %v1322
        %v1329 = vpack.c.b16 %v1325, %v1324
        %v1335 = vsel %vm487, %v1309, 0
        %1337 = vmatprep.subr.bf16.mxu0 0
        %1338 = vmatpush1.bf16.msra.mxu0 %v1326
        %1339 = vmatprep.subr.bf16.mxu0 0
        %1340 = vmatpush1.bf16.msra.mxu0 %v1327
        %1341 = vmatprep.subr.bf16.mxu0 0
        %1342 = vmatpush1.bf16.msra.mxu0 %v1328
        %1343 = vmatprep.subr.bf16.mxu0 0
        %1344 = vmatpush1.bf16.msra.mxu0 %v1329
        %1345 = vmatprep.subr.bf16.mxu0 0
        %1346 = vmatpush1.bf16.msra.mxu0 0
        %1347 = vmatprep.subr.bf16.mxu0 0
        %1348 = vmatpush1.bf16.msra.mxu0 0
        %1349 = vmatprep.subr.bf16.mxu0 0
        %1350 = vmatpush1.bf16.msra.mxu0 0
        %1351 = vmatprep.subr.bf16.mxu0 0
        %1352 = vmatpush1.bf16.msra.mxu0 0
        %1353 = vmatprep.subr.bf16.mxu0 0
        %1354 = vmatpush1.bf16.msra.mxu0 0
        %1355 = vmatprep.subr.bf16.mxu0 0
        %1356 = vmatpush1.bf16.msra.mxu0 0
        %1357 = vmatprep.subr.bf16.mxu0 0
        %1358 = vmatpush1.bf16.msra.mxu0 0
        %1359 = vmatprep.subr.bf16.mxu0 0
        %1360 = vmatpush1.bf16.msra.mxu0 0
        %1361 = vmatprep.subr.bf16.mxu0 0
        %1362 = vmatpush1.bf16.msra.mxu0 0
        %1363 = vmatprep.subr.bf16.mxu0 0
        %1364 = vmatpush1.bf16.msra.mxu0 0
        %1365 = vmatprep.subr.bf16.mxu0 0
        %1366 = vmatpush1.bf16.msra.mxu0 0
        %1367 = vmatprep.subr.bf16.mxu0 0
        %1368 = vmatpush1.bf16.msra.mxu0 0
        %1369 = vmatprep.mubr.bf16.mxu0 0
        %1370 = vmatmul.mubr.bf16.gmra.mrb[0].mxu0 %v1335
        %v1371 = vpop.f32.mrb[0].mxu0
        %v1372 = vadd.f32 %v1277, %v1371
        %v1373 = vpop.f32.mrb[0].mxu0
        %v1374 = vpop.f32.mrb[0].mxu0
        %v1375 = vpop.f32.mrb[0].mxu0
        %1376 = vdwg.mxu0
        %1377 = vst.msk [vmem:[%s428] sm:$0xff] %vm555, %v1372
        %s1378 = sand.u32 %s295, 1
        %s1379 = scalar_lea.sflag [#allocation3], %s1378
        %s1380 = sand.u32 %s295, 1
        %s1381 = smul.addr %s1380, 8
        %s1382 = scalar_lea.vmem [#allocation2], %s1381
        // Predicated region
        $region65: #{tpu_custom_call.1} parent=63 // pred_check
          %p1383 = pneg %p305
        $region66: #{tpu_custom_call.1} parent=63 // pred_check_branch
          %1385 = sbr.rel (%p1383) target = $region68
        $region67: #{tpu_custom_call.1} parent=63 // pred_region
          %s1387 = ssub.s32 128, 128
          %1388 = vsyncadd %s1379, %s1387
          %s1389 = sadd.s32 %s30, %s29
          %s1390 = smul.addr %s1389, 128
          %s1391 = scalar_lea.hbm %s11, %s1390
          %s1393 = sshll.u32 %s1382, 4
          %s1394 = int_to_ptr.vmem [resolvable:$true] %s1393
          %1396 = dma.vmem_to_hbm [thread:$0]  %s1394, 128, %s1391, %s1379
        $region68: #{tpu_custom_call.1} parent=63 // pred_fallthru
          _
      $region64: #{tpu_custom_call.1} parent=5 // pred_fallthru
        _
      %p1397 = scmp.le.s32.totalorder 2, %s20
      // Predicated region
      $region69: #{tpu_custom_call.1} parent=5 // pred_check
        %p1398 = pneg %p1397
      $region70: #{tpu_custom_call.1} parent=5 // pred_check_branch
        %1400 = sbr.rel (%p1398) target = $region72
      $region71: #{tpu_custom_call.1} parent=5 // pred_region
        %s1401 = ssub.s32 %s20, 2
        // Predicated region
        $region73: #{tpu_custom_call.1} parent=71 // pred_check
          %p1402 = pneg %p311
        $region74: #{tpu_custom_call.1} parent=71 // pred_check_branch
          %1404 = sbr.rel (%p1402) target = $region76
        $region75: #{tpu_custom_call.1} parent=71 // pred_region
          %s1405 = sand.u32 %s296, 1
          %s1406 = scalar_lea.sflag [#allocation3], %s1405
          %s1407 = sand.u32 %s296, 1
          %s1408 = smul.addr %s1407, 8
          %s1409 = scalar_lea.vmem [#allocation2], %s1408
          %1410 = dma.done %s1406, 128
        $region76: #{tpu_custom_call.1} parent=71 // pred_fallthru
          _
      $region72: #{tpu_custom_call.1} parent=5 // pred_fallthru
        _
    $region6: #{tpu_custom_call.1} parent=1 // loop_footer
      %s24 = sadd.s32 1, %s20
    $region7: #{tpu_custom_call.1} parent=1 // loop_footer_branch
      %19 = sbr.rel target = $region3
    $region8: #{tpu_custom_call.1} parent=1 // loop_exit
      _
    %1411 = vsyncpa [#allocation3], 1
    %s1412 = scalar_lea.sflag [#allocation3], 1
    %1413 = vsyncpa %s1412, 1

</llo_original>
